<compile_context>
chip_gen: v7x
topology: tpu7x:2x2x1
jax: 0.10.0
libtpu: 0.0.40
codegen_flags: <defaults>
</compile_context>

<pallas_src>
import functools

import jax
import jax.numpy as jnp
from jax.experimental import pallas as pl
from jax.experimental.pallas import tpu as pltpu


def _round_up(v, m):
    return ((v + m - 1) // m) * m


def _vmem_bytes_estimate(tq, n_pad, d, heads, dim_head, x_bytes):
    """Rough upper bound on simultaneously-live VMEM for one grid step."""
    inner = heads * dim_head
    f32, bf16 = 4, 2
    est = 2 * n_pad * d * x_bytes                    # x block (double buffered)
    est += 2 * tq * d * x_bytes                      # out block (double buffered)
    est += 2 * (3 * d * inner + inner * d) * bf16    # Wqkv + Wo (double buffered)
    est += 2 * 3 * d * f32                           # gamma / beta / bias
    est += 3 * n_pad * inner * bf16                  # Q/K/V scratch (bf16)
    est += n_pad * d * (f32 + bf16)                  # LayerNorm intermediates
    est += n_pad * 3 * inner * (f32 + bf16)          # fused QKV result + casts
    est += 3 * heads * tq * n_pad * f32              # dots / exp / attn (f32)
    est += heads * tq * dim_head * f32               # per-head attention output
    est += tq * inner * (f32 + bf16) + tq * d * f32  # merged heads + projection
    return est


def _choose_tiling(n, d, heads, dim_head, x_bytes, vmem_budget):
    """Pick (query_tile, padded_seq_len).  Scratch is bf16, so keep the query
    tile a multiple of 16 sublanes (32 for 1-byte I/O) for aligned slices."""
    m = 32 if x_bytes == 1 else 16
    n_pad = _round_up(n, 128) if n > 128 else _round_up(n, m)
    cands = [c for c in (512, 256, 128, 64, 32, 16)
             if c % m == 0 and n_pad % c == 0]
    if not cands:
        cands = [n_pad]
    for tq in cands:                                  # largest first
        if _vmem_bytes_estimate(tq, n_pad, d, heads, dim_head, x_bytes) <= vmem_budget:
            return tq, n_pad
    return cands[-1], n_pad


def _attention_kernel(x_ref, gamma_ref, beta_ref, wqkv_ref, wo_ref, bo_ref,
                      o_ref, q_sc, k_sc, v_sc, *, heads, dim_head, eps, n_orig):
    """Grid step (b, q): reuse per-batch Q/K/V scratch; attention for one q tile."""
    inner = heads * dim_head
    n_pad = x_ref.shape[1]
    tq = o_ref.shape[1]
    qi = pl.program_id(1)

    # ---- once per batch: LayerNorm + fused QKV projection into VMEM scratch ----
    @pl.when(qi == 0)
    def _project():
        x = x_ref[0].astype(jnp.float32)                                 # (Np, D)
        mean = jnp.mean(x, axis=-1, keepdims=True)
        var = jnp.mean(jnp.square(x - mean), axis=-1, keepdims=True)
        xn = (x - mean) * jax.lax.rsqrt(var + eps)
        xn = xn * gamma_ref[...].astype(jnp.float32) + beta_ref[...].astype(jnp.float32)
        # One wide MXU matmul (softmax scale already folded into the Q columns).
        qkv = jnp.dot(xn.astype(jnp.bfloat16), wqkv_ref[...],
                      preferred_element_type=jnp.float32)                # (Np, 3*inner)
        # Head split via static lane slices (layout only, once per batch).
        for h in range(heads):
            lo = h * dim_head
            q_sc[h] = qkv[:, 0 * inner + lo:0 * inner + lo + dim_head].astype(jnp.bfloat16)
            k_sc[h] = qkv[:, 1 * inner + lo:1 * inner + lo + dim_head].astype(jnp.bfloat16)
            v_sc[h] = qkv[:, 2 * inner + lo:2 * inner + lo + dim_head].astype(jnp.bfloat16)

    # ---- per query tile: batched-head attention + output projection ----
    qs = pl.multiple_of(qi * tq, tq)
    q_t = q_sc[:, pl.ds(qs, tq), :]                                      # (h, tq, dh) bf16
    k_t = k_sc[...]                                                      # (h, Np, dh) bf16
    v_t = v_sc[...]                                                      # (h, Np, dh) bf16

    dots = jnp.einsum("hqd,hkd->hqk", q_t, k_t,
                      preferred_element_type=jnp.float32)                # (h, tq, Np) f32
    if n_pad != n_orig:                                                  # mask padded KV cols
        col = jax.lax.broadcasted_iota(jnp.int32, (tq, n_pad), 1)
        dots = dots + jnp.where(col < n_orig, 0.0, -1e30).astype(jnp.float32)

    dots = dots - jnp.max(dots, axis=-1, keepdims=True)                  # stable softmax
    e = jnp.exp(dots)
    # approx reciprocal uses the EUP slot; ~1e-3 relative error (inference OK).
    attn = e * pl.reciprocal(jnp.sum(e, axis=-1, keepdims=True), approx=True)

    outh = jnp.einsum("hqk,hkd->hqd", attn.astype(jnp.bfloat16), v_t,
                      preferred_element_type=jnp.float32)                # (h, tq, dh) f32
    # Merge heads with a lane concat (layout only -- no matmuls in this loop).
    out = jnp.concatenate([outh[h] for h in range(heads)], axis=-1)      # (tq, inner)

    y = jnp.dot(out.astype(jnp.bfloat16), wo_ref[...],
                preferred_element_type=jnp.float32) + bo_ref[...]
    o_ref[0] = y.astype(o_ref.dtype)


def attention_forward(x, gamma, beta, w_qkv, w_out, b_out, *, heads, dim_head,
                      eps=1e-5):
    """x: (B, N, D). w_qkv: (3*inner, D) (PyTorch layout). w_out: (D, inner)."""
    B, N, D = x.shape
    inner = heads * dim_head
    scale = dim_head ** (-0.5)

    # Per-generation VMEM limit (~85% of physical: ~54 MiB v7x, ~108 MiB v5e/v6e).
    try:
        vmem_cap = int(getattr(pltpu.get_tpu_info(), "vmem_capacity_bytes", 0) or 0)
    except Exception:
        vmem_cap = 0
    if vmem_cap <= 0:
        vmem_cap = 64 * 1024 * 1024        # conservative fallback (safe on all gens)
    vmem_limit = int(vmem_cap * 0.85)

    x_bytes = jnp.dtype(x.dtype).itemsize
    tq, n_pad = _choose_tiling(N, D, heads, dim_head, x_bytes,
                               int(vmem_limit * 0.75))
    num_q = n_pad // tq

    # Pad the sequence to a lane/sublane friendly length (masked inside kernel).
    x_p = x if n_pad == N else jnp.pad(x, ((0, 0), (0, n_pad - N), (0, 0)))

    # Weight prep: fused (D, 3*inner) QKV weight; softmax scale folded into the
    # Q columns; everything that feeds the MXU is bf16.
    w_qkv = jnp.asarray(w_qkv, jnp.float32)                              # (3*inner, D)
    col_scale = jnp.concatenate([jnp.full((inner,), scale, jnp.float32),
                                 jnp.ones((2 * inner,), jnp.float32)])
    w_qkv_bf = (w_qkv.T * col_scale).astype(jnp.bfloat16)                # (D, 3*inner)
    w_o_bf = jnp.asarray(w_out, jnp.float32).T.astype(jnp.bfloat16)      # (inner, D)
    gamma2 = jnp.asarray(gamma, jnp.float32).reshape(1, D)
    beta2 = jnp.asarray(beta, jnp.float32).reshape(1, D)
    b_out2 = jnp.asarray(b_out, jnp.float32).reshape(1, D)

    kernel = functools.partial(_attention_kernel, heads=heads,
                               dim_head=dim_head, eps=eps, n_orig=N)

    out = pl.pallas_call(
        kernel,
        out_shape=jax.ShapeDtypeStruct((B, n_pad, D), x.dtype),
        grid_spec=pltpu.PrefetchScalarGridSpec(
            num_scalar_prefetch=0,
            grid=(B, num_q),
            in_specs=[
                pl.BlockSpec((1, n_pad, D), lambda b, q: (b, 0, 0)),     # x (full seq)
                pl.BlockSpec((1, D), lambda b, q: (0, 0)),               # gamma
                pl.BlockSpec((1, D), lambda b, q: (0, 0)),               # beta
                pl.BlockSpec((D, 3 * inner), lambda b, q: (0, 0)),       # Wqkv (Q scaled)
                pl.BlockSpec((inner, D), lambda b, q: (0, 0)),           # Wo
                pl.BlockSpec((1, D), lambda b, q: (0, 0)),               # b_out
            ],
            out_specs=pl.BlockSpec((1, tq, D), lambda b, q: (b, q, 0)),
            scratch_shapes=[
                pltpu.VMEM((heads, n_pad, dim_head), jnp.bfloat16),      # Q scratch
                pltpu.VMEM((heads, n_pad, dim_head), jnp.bfloat16),      # K scratch
                pltpu.VMEM((heads, n_pad, dim_head), jnp.bfloat16),      # V scratch
            ],
        ),
        compiler_params=pltpu.CompilerParams(
            # B parallel (megacore sharding on v7x); q "arbitrary" so the
            # per-batch Q/K/V scratch legally carries across query tiles.
            dimension_semantics=("parallel", "arbitrary"),
            vmem_limit_bytes=vmem_limit),
    )(x_p, gamma2, beta2, w_qkv_bf, w_o_bf, b_out2)

    return out if n_pad == N else out[:, :N, :]


def _reference_forward(x, gamma, beta, w_qkv, w_out, b_out, *, heads, dim_head,
                       eps=1e-5):
    """Pure-JAX (f32) reference mirroring the PyTorch module (d=None, p=0)."""
    B, N, D = x.shape
    inner = heads * dim_head
    scale = dim_head ** (-0.5)
    mean = jnp.mean(x, axis=-1, keepdims=True)
    var = jnp.mean((x - mean) ** 2, axis=-1, keepdims=True)
    xn = (x - mean) / jnp.sqrt(var + eps) * gamma + beta
    qkv = xn @ w_qkv.T                                        # (B, N, 3*inner)
    q, k, v = jnp.split(qkv, 3, axis=-1)

    def split_heads(t):                                       # b n (h d) -> b h n d
        return t.reshape(B, N, heads, dim_head).transpose(0, 2, 1, 3)

    q, k, v = map(split_heads, (q, k, v))
    dots = jnp.einsum("bhnd,bhmd->bhnm", q, k) * scale
    attn = jax.nn.softmax(dots, axis=-1)
    out = jnp.einsum("bhnm,bhmd->bhnd", attn, v)
    out = out.transpose(0, 2, 1, 3).reshape(B, N, inner)      # b h n d -> b n (h d)
    return out @ w_out.T + b_out


if __name__ == "__main__":
    # Small shapes consistent with the module: dim=32, heads=4, dim_head=8.
    B, N, D = 2, 8, 32
    heads, dim_head = 4, 8
    inner = heads * dim_head

    key = jax.random.PRNGKey(0)
    kx, kq, ko, kb = jax.random.split(key, 4)

    x = jax.random.normal(kx, (B, N, D), dtype=jnp.float32)

    # Deterministic synthetic parameters (LayerNorm init: gamma=1, beta=0).
    gamma = jnp.ones((D,), dtype=jnp.float32)
    beta = jnp.zeros((D,), dtype=jnp.float32)
    w_qkv = jax.random.normal(kq, (3 * inner, D), dtype=jnp.float32) * 0.05
    w_out = jax.random.normal(ko, (D, inner), dtype=jnp.float32) * 0.05
    b_out = jax.random.normal(kb, (D,), dtype=jnp.float32) * 0.01

    y = attention_forward(x, gamma, beta, w_qkv, w_out, b_out,
                          heads=heads, dim_head=dim_head)
    y = jax.block_until_ready(y)

    y_ref = _reference_forward(x, gamma, beta, w_qkv, w_out, b_out,
                               heads=heads, dim_head=dim_head)
    assert y.shape == (B, N, D)
    # bf16 MXU operands + approx reciprocal -> slightly looser tolerance.
    assert jnp.allclose(y, y_ref, atol=2e-2, rtol=2e-2), "mismatch vs reference"

    print("KERNEL_OK")
</pallas_src>

<mosaic_0001>
module attributes {stable_mosaic.version = 11 : i64} {
  func.func @_attention_kernel(%arg0: i32, %arg1: i32, %arg2: memref<1x16x32xf32, #tpu.memory_space<vmem>>, %arg3: memref<1x32xf32, #tpu.memory_space<vmem>>, %arg4: memref<1x32xf32, #tpu.memory_space<vmem>>, %arg5: memref<32x96xbf16, #tpu.memory_space<vmem>>, %arg6: memref<32x32xbf16, #tpu.memory_space<vmem>>, %arg7: memref<1x32xf32, #tpu.memory_space<vmem>>, %arg8: memref<1x16x32xf32, #tpu.memory_space<vmem>>, %arg9: memref<4x16x8xbf16, #tpu.memory_space<vmem>>, %arg10: memref<4x16x8xbf16, #tpu.memory_space<vmem>>, %arg11: memref<4x16x8xbf16, #tpu.memory_space<vmem>>) attributes {dimension_semantics = [#tpu.dimension_semantics<parallel>, #tpu.dimension_semantics<arbitrary>], iteration_bounds = array<i64: 2, 1>, scalar_prefetch = 0 : i64, scratch_operands = 3 : i64, tpu.core_type = #tpu.core_type<tc>, window_params = [{transform_indices = @transform_0, window_bounds = array<i64: 1, 16, 32>}, {pipeline_mode = #tpu.pipeline_mode<synchronous>, transform_indices = @transform_1, window_bounds = array<i64: 1, 32>}, {pipeline_mode = #tpu.pipeline_mode<synchronous>, transform_indices = @transform_2, window_bounds = array<i64: 1, 32>}, {pipeline_mode = #tpu.pipeline_mode<synchronous>, transform_indices = @transform_3, window_bounds = array<i64: 32, 96>}, {pipeline_mode = #tpu.pipeline_mode<synchronous>, transform_indices = @transform_4, window_bounds = array<i64: 32, 32>}, {pipeline_mode = #tpu.pipeline_mode<synchronous>, transform_indices = @transform_5, window_bounds = array<i64: 1, 32>}, {transform_indices = @transform_6, window_bounds = array<i64: 1, 16, 32>}]} {
    %c0_i32 = arith.constant 0 : i32
    %0 = arith.cmpi eq, %arg1, %c0_i32 : i32
    %1 = arith.extui %0 : i1 to i32
    %c0_i32_0 = arith.constant 0 : i32
    %2 = arith.cmpi ne, %1, %c0_i32_0 : i32
    scf.if %2 {
      %c0_21 = arith.constant 0 : index
      %c0_22 = arith.constant 0 : index
      %c0_23 = arith.constant 0 : index
      %49 = vector.load %arg2[%c0_21, %c0_22, %c0_23] : memref<1x16x32xf32, #tpu.memory_space<vmem>>, vector<1x16x32xf32>
      %50 = vector.shape_cast %49 : vector<1x16x32xf32> to vector<16x32xf32>
      %cst_24 = arith.constant dense<0.000000e+00> : vector<16xf32>
      %51 = vector.multi_reduction <add>, %50, %cst_24 [1] : vector<16x32xf32> to vector<16xf32>
      %52 = vector.shape_cast %51 : vector<16xf32> to vector<16x1xf32>
      %cst_25 = arith.constant 3.200000e+01 : f32
      %53 = vector.broadcast %cst_25 : f32 to vector<16x1xf32>
      %54 = arith.divf %52, %53 : vector<16x1xf32>
      %55 = vector.broadcast %54 : vector<16x1xf32> to vector<16x32xf32>
      %56 = arith.subf %50, %55 : vector<16x32xf32>
      %57 = arith.mulf %56, %56 : vector<16x32xf32>
      %cst_26 = arith.constant dense<0.000000e+00> : vector<16xf32>
      %58 = vector.multi_reduction <add>, %57, %cst_26 [1] : vector<16x32xf32> to vector<16xf32>
      %59 = vector.shape_cast %58 : vector<16xf32> to vector<16x1xf32>
      %cst_27 = arith.constant 3.200000e+01 : f32
      %60 = vector.broadcast %cst_27 : f32 to vector<16x1xf32>
      %61 = arith.divf %59, %60 : vector<16x1xf32>
      %62 = vector.broadcast %54 : vector<16x1xf32> to vector<16x32xf32>
      %63 = arith.subf %50, %62 : vector<16x32xf32>
      %cst_28 = arith.constant 9.99999974E-6 : f32
      %64 = vector.broadcast %cst_28 : f32 to vector<16x1xf32>
      %65 = arith.addf %61, %64 : vector<16x1xf32>
      %66 = math.rsqrt %65 : vector<16x1xf32>
      %67 = vector.broadcast %66 : vector<16x1xf32> to vector<16x32xf32>
      %68 = arith.mulf %63, %67 : vector<16x32xf32>
      %c0_29 = arith.constant 0 : index
      %c0_30 = arith.constant 0 : index
      %69 = vector.load %arg3[%c0_29, %c0_30] : memref<1x32xf32, #tpu.memory_space<vmem>>, vector<1x32xf32>
      %70 = vector.broadcast %69 : vector<1x32xf32> to vector<16x32xf32>
      %71 = arith.mulf %68, %70 : vector<16x32xf32>
      %c0_31 = arith.constant 0 : index
      %c0_32 = arith.constant 0 : index
      %72 = vector.load %arg4[%c0_31, %c0_32] : memref<1x32xf32, #tpu.memory_space<vmem>>, vector<1x32xf32>
      %73 = vector.broadcast %72 : vector<1x32xf32> to vector<16x32xf32>
      %74 = arith.addf %71, %73 : vector<16x32xf32>
      %75 = arith.truncf %74 : vector<16x32xf32> to vector<16x32xbf16>
      %c0_33 = arith.constant 0 : index
      %c0_34 = arith.constant 0 : index
      %76 = vector.load %arg5[%c0_33, %c0_34] : memref<32x96xbf16, #tpu.memory_space<vmem>>, vector<32x96xbf16>
      %cst_35 = arith.constant dense<0.000000e+00> : vector<16x96xf32>
      %77 = tpu.matmul %75, %76, %cst_35 {dimension_numbers = #tpu.dot_dimension_numbers<[1], [0], [0], [1], [0, 0, 1, 1], [], []>} : vector<16x32xbf16>, vector<32x96xbf16>, vector<16x96xf32> -> vector<16x96xf32>
      %78 = vector.extract_strided_slice %77 {offsets = [0, 0], sizes = [16, 8], strides = [1, 1]} : vector<16x96xf32> to vector<16x8xf32>
      %79 = arith.truncf %78 : vector<16x8xf32> to vector<16x8xbf16>
      %c0_36 = arith.constant 0 : index
      %c0_37 = arith.constant 0 : index
      %c0_38 = arith.constant 0 : index
      %80 = vector.load %arg9[%c0_36, %c0_37, %c0_38] : memref<4x16x8xbf16, #tpu.memory_space<vmem>>, vector<1x16x8xbf16>
      %81 = vector.shape_cast %80 : vector<1x16x8xbf16> to vector<16x8xbf16>
      %82 = vector.shape_cast %79 : vector<16x8xbf16> to vector<1x16x8xbf16>
      tpu.vector_store %arg9[%c0_36, %c0_37, %c0_38], %82 {strides = array<i32>} : memref<4x16x8xbf16, #tpu.memory_space<vmem>>, vector<1x16x8xbf16>,
      %83 = vector.extract_strided_slice %77 {offsets = [0, 32], sizes = [16, 8], strides = [1, 1]} : vector<16x96xf32> to vector<16x8xf32>
      %84 = arith.truncf %83 : vector<16x8xf32> to vector<16x8xbf16>
      %c0_39 = arith.constant 0 : index
      %c0_40 = arith.constant 0 : index
      %c0_41 = arith.constant 0 : index
      %85 = vector.load %arg10[%c0_39, %c0_40, %c0_41] : memref<4x16x8xbf16, #tpu.memory_space<vmem>>, vector<1x16x8xbf16>
      %86 = vector.shape_cast %85 : vector<1x16x8xbf16> to vector<16x8xbf16>
      %87 = vector.shape_cast %84 : vector<16x8xbf16> to vector<1x16x8xbf16>
      tpu.vector_store %arg10[%c0_39, %c0_40, %c0_41], %87 {strides = array<i32>} : memref<4x16x8xbf16, #tpu.memory_space<vmem>>, vector<1x16x8xbf16>,
      %88 = vector.extract_strided_slice %77 {offsets = [0, 64], sizes = [16, 8], strides = [1, 1]} : vector<16x96xf32> to vector<16x8xf32>
      %89 = arith.truncf %88 : vector<16x8xf32> to vector<16x8xbf16>
      %c0_42 = arith.constant 0 : index
      %c0_43 = arith.constant 0 : index
      %c0_44 = arith.constant 0 : index
      %90 = vector.load %arg11[%c0_42, %c0_43, %c0_44] : memref<4x16x8xbf16, #tpu.memory_space<vmem>>, vector<1x16x8xbf16>
      %91 = vector.shape_cast %90 : vector<1x16x8xbf16> to vector<16x8xbf16>
      %92 = vector.shape_cast %89 : vector<16x8xbf16> to vector<1x16x8xbf16>
      tpu.vector_store %arg11[%c0_42, %c0_43, %c0_44], %92 {strides = array<i32>} : memref<4x16x8xbf16, #tpu.memory_space<vmem>>, vector<1x16x8xbf16>,
      %93 = vector.extract_strided_slice %77 {offsets = [0, 8], sizes = [16, 8], strides = [1, 1]} : vector<16x96xf32> to vector<16x8xf32>
      %94 = arith.truncf %93 : vector<16x8xf32> to vector<16x8xbf16>
      %c1 = arith.constant 1 : index
      %c0_45 = arith.constant 0 : index
      %c0_46 = arith.constant 0 : index
      %95 = vector.load %arg9[%c1, %c0_45, %c0_46] : memref<4x16x8xbf16, #tpu.memory_space<vmem>>, vector<1x16x8xbf16>
      %96 = vector.shape_cast %95 : vector<1x16x8xbf16> to vector<16x8xbf16>
      %97 = vector.shape_cast %94 : vector<16x8xbf16> to vector<1x16x8xbf16>
      tpu.vector_store %arg9[%c1, %c0_45, %c0_46], %97 {strides = array<i32>} : memref<4x16x8xbf16, #tpu.memory_space<vmem>>, vector<1x16x8xbf16>,
      %98 = vector.extract_strided_slice %77 {offsets = [0, 40], sizes = [16, 8], strides = [1, 1]} : vector<16x96xf32> to vector<16x8xf32>
      %99 = arith.truncf %98 : vector<16x8xf32> to vector<16x8xbf16>
      %c1_47 = arith.constant 1 : index
      %c0_48 = arith.constant 0 : index
      %c0_49 = arith.constant 0 : index
      %100 = vector.load %arg10[%c1_47, %c0_48, %c0_49] : memref<4x16x8xbf16, #tpu.memory_space<vmem>>, vector<1x16x8xbf16>
      %101 = vector.shape_cast %100 : vector<1x16x8xbf16> to vector<16x8xbf16>
      %102 = vector.shape_cast %99 : vector<16x8xbf16> to vector<1x16x8xbf16>
      tpu.vector_store %arg10[%c1_47, %c0_48, %c0_49], %102 {strides = array<i32>} : memref<4x16x8xbf16, #tpu.memory_space<vmem>>, vector<1x16x8xbf16>,
      %103 = vector.extract_strided_slice %77 {offsets = [0, 72], sizes = [16, 8], strides = [1, 1]} : vector<16x96xf32> to vector<16x8xf32>
      %104 = arith.truncf %103 : vector<16x8xf32> to vector<16x8xbf16>
      %c1_50 = arith.constant 1 : index
      %c0_51 = arith.constant 0 : index
      %c0_52 = arith.constant 0 : index
      %105 = vector.load %arg11[%c1_50, %c0_51, %c0_52] : memref<4x16x8xbf16, #tpu.memory_space<vmem>>, vector<1x16x8xbf16>
      %106 = vector.shape_cast %105 : vector<1x16x8xbf16> to vector<16x8xbf16>
      %107 = vector.shape_cast %104 : vector<16x8xbf16> to vector<1x16x8xbf16>
      tpu.vector_store %arg11[%c1_50, %c0_51, %c0_52], %107 {strides = array<i32>} : memref<4x16x8xbf16, #tpu.memory_space<vmem>>, vector<1x16x8xbf16>,
      %108 = vector.extract_strided_slice %77 {offsets = [0, 16], sizes = [16, 8], strides = [1, 1]} : vector<16x96xf32> to vector<16x8xf32>
      %109 = arith.truncf %108 : vector<16x8xf32> to vector<16x8xbf16>
      %c2 = arith.constant 2 : index
      %c0_53 = arith.constant 0 : index
      %c0_54 = arith.constant 0 : index
      %110 = vector.load %arg9[%c2, %c0_53, %c0_54] : memref<4x16x8xbf16, #tpu.memory_space<vmem>>, vector<1x16x8xbf16>
      %111 = vector.shape_cast %110 : vector<1x16x8xbf16> to vector<16x8xbf16>
      %112 = vector.shape_cast %109 : vector<16x8xbf16> to vector<1x16x8xbf16>
      tpu.vector_store %arg9[%c2, %c0_53, %c0_54], %112 {strides = array<i32>} : memref<4x16x8xbf16, #tpu.memory_space<vmem>>, vector<1x16x8xbf16>,
      %113 = vector.extract_strided_slice %77 {offsets = [0, 48], sizes = [16, 8], strides = [1, 1]} : vector<16x96xf32> to vector<16x8xf32>
      %114 = arith.truncf %113 : vector<16x8xf32> to vector<16x8xbf16>
      %c2_55 = arith.constant 2 : index
      %c0_56 = arith.constant 0 : index
      %c0_57 = arith.constant 0 : index
      %115 = vector.load %arg10[%c2_55, %c0_56, %c0_57] : memref<4x16x8xbf16, #tpu.memory_space<vmem>>, vector<1x16x8xbf16>
      %116 = vector.shape_cast %115 : vector<1x16x8xbf16> to vector<16x8xbf16>
      %117 = vector.shape_cast %114 : vector<16x8xbf16> to vector<1x16x8xbf16>
      tpu.vector_store %arg10[%c2_55, %c0_56, %c0_57], %117 {strides = array<i32>} : memref<4x16x8xbf16, #tpu.memory_space<vmem>>, vector<1x16x8xbf16>,
      %118 = vector.extract_strided_slice %77 {offsets = [0, 80], sizes = [16, 8], strides = [1, 1]} : vector<16x96xf32> to vector<16x8xf32>
      %119 = arith.truncf %118 : vector<16x8xf32> to vector<16x8xbf16>
      %c2_58 = arith.constant 2 : index
      %c0_59 = arith.constant 0 : index
      %c0_60 = arith.constant 0 : index
      %120 = vector.load %arg11[%c2_58, %c0_59, %c0_60] : memref<4x16x8xbf16, #tpu.memory_space<vmem>>, vector<1x16x8xbf16>
      %121 = vector.shape_cast %120 : vector<1x16x8xbf16> to vector<16x8xbf16>
      %122 = vector.shape_cast %119 : vector<16x8xbf16> to vector<1x16x8xbf16>
      tpu.vector_store %arg11[%c2_58, %c0_59, %c0_60], %122 {strides = array<i32>} : memref<4x16x8xbf16, #tpu.memory_space<vmem>>, vector<1x16x8xbf16>,
      %123 = vector.extract_strided_slice %77 {offsets = [0, 24], sizes = [16, 8], strides = [1, 1]} : vector<16x96xf32> to vector<16x8xf32>
      %124 = arith.truncf %123 : vector<16x8xf32> to vector<16x8xbf16>
      %c3 = arith.constant 3 : index
      %c0_61 = arith.constant 0 : index
      %c0_62 = arith.constant 0 : index
      %125 = vector.load %arg9[%c3, %c0_61, %c0_62] : memref<4x16x8xbf16, #tpu.memory_space<vmem>>, vector<1x16x8xbf16>
      %126 = vector.shape_cast %125 : vector<1x16x8xbf16> to vector<16x8xbf16>
      %127 = vector.shape_cast %124 : vector<16x8xbf16> to vector<1x16x8xbf16>
      tpu.vector_store %arg9[%c3, %c0_61, %c0_62], %127 {strides = array<i32>} : memref<4x16x8xbf16, #tpu.memory_space<vmem>>, vector<1x16x8xbf16>,
      %128 = vector.extract_strided_slice %77 {offsets = [0, 56], sizes = [16, 8], strides = [1, 1]} : vector<16x96xf32> to vector<16x8xf32>
      %129 = arith.truncf %128 : vector<16x8xf32> to vector<16x8xbf16>
      %c3_63 = arith.constant 3 : index
      %c0_64 = arith.constant 0 : index
      %c0_65 = arith.constant 0 : index
      %130 = vector.load %arg10[%c3_63, %c0_64, %c0_65] : memref<4x16x8xbf16, #tpu.memory_space<vmem>>, vector<1x16x8xbf16>
      %131 = vector.shape_cast %130 : vector<1x16x8xbf16> to vector<16x8xbf16>
      %132 = vector.shape_cast %129 : vector<16x8xbf16> to vector<1x16x8xbf16>
      tpu.vector_store %arg10[%c3_63, %c0_64, %c0_65], %132 {strides = array<i32>} : memref<4x16x8xbf16, #tpu.memory_space<vmem>>, vector<1x16x8xbf16>,
      %133 = vector.extract_strided_slice %77 {offsets = [0, 88], sizes = [16, 8], strides = [1, 1]} : vector<16x96xf32> to vector<16x8xf32>
      %134 = arith.truncf %133 : vector<16x8xf32> to vector<16x8xbf16>
      %c3_66 = arith.constant 3 : index
      %c0_67 = arith.constant 0 : index
      %c0_68 = arith.constant 0 : index
      %135 = vector.load %arg11[%c3_66, %c0_67, %c0_68] : memref<4x16x8xbf16, #tpu.memory_space<vmem>>, vector<1x16x8xbf16>
      %136 = vector.shape_cast %135 : vector<1x16x8xbf16> to vector<16x8xbf16>
      %137 = vector.shape_cast %134 : vector<16x8xbf16> to vector<1x16x8xbf16>
      tpu.vector_store %arg11[%c3_66, %c0_67, %c0_68], %137 {strides = array<i32>} : memref<4x16x8xbf16, #tpu.memory_space<vmem>>, vector<1x16x8xbf16>,
    } else {
    }
    %c16_i32 = arith.constant 16 : i32
    %3 = arith.muli %arg1, %c16_i32 : i32
    %4 = tpu.assume_multiple %3, 16 : i32
    %c0 = arith.constant 0 : index
    %5 = arith.index_cast %4 : i32 to index
    %c0_1 = arith.constant 0 : index
    %6 = vector.load %arg9[%c0, %5, %c0_1] : memref<4x16x8xbf16, #tpu.memory_space<vmem>>, vector<4x16x8xbf16>
    %c0_2 = arith.constant 0 : index
    %c0_3 = arith.constant 0 : index
    %c0_4 = arith.constant 0 : index
    %7 = vector.load %arg10[%c0_2, %c0_3, %c0_4] : memref<4x16x8xbf16, #tpu.memory_space<vmem>>, vector<4x16x8xbf16>
    %c0_5 = arith.constant 0 : index
    %c0_6 = arith.constant 0 : index
    %c0_7 = arith.constant 0 : index
    %8 = vector.load %arg11[%c0_5, %c0_6, %c0_7] : memref<4x16x8xbf16, #tpu.memory_space<vmem>>, vector<4x16x8xbf16>
    "tpu.trace_start"() <{level = 10 : i32, message = "hqd,hkd->hqk"}> : () -> ()
    %cst = arith.constant dense<0.000000e+00> : vector<4x16x16xf32>
    %9 = tpu.matmul %6, %7, %cst {dimension_numbers = #tpu.dot_dimension_numbers<[2], [2], [1], [1], [0, 0, 0, 1, 1, 1], [0], [0]>} : vector<4x16x8xbf16>, vector<4x16x8xbf16>, vector<4x16x16xf32> -> vector<4x16x16xf32>
    "tpu.trace_stop"() : () -> ()
    %10 = tpu.iota {dimensions = array<i32: 1>} : vector<16x16xi32>
    %c8_i32 = arith.constant 8 : i32
    %11 = vector.broadcast %c8_i32 : i32 to vector<16x16xi32>
    %12 = arith.cmpi slt, %10, %11 : vector<16x16xi32>
    %cst_8 = arith.constant 0.000000e+00 : f32
    %cst_9 = arith.constant -1.000000e+30 : f32
    %13 = vector.broadcast %cst_8 : f32 to vector<16x16xf32>
    %14 = vector.broadcast %cst_9 : f32 to vector<16x16xf32>
    %15 = arith.select %12, %13, %14 : vector<16x16xi1>, vector<16x16xf32>
    %16 = vector.shape_cast %15 : vector<16x16xf32> to vector<1x16x16xf32>
    %17 = vector.broadcast %16 : vector<1x16x16xf32> to vector<4x16x16xf32>
    %18 = arith.addf %9, %17 : vector<4x16x16xf32>
    %cst_10 = arith.constant dense<0xFF800000> : vector<4x16xf32>
    %19 = vector.multi_reduction <maximumf>, %18, %cst_10 [2] : vector<4x16x16xf32> to vector<4x16xf32>
    %20 = vector.shape_cast %19 : vector<4x16xf32> to vector<4x16x1xf32>
    %21 = vector.broadcast %20 : vector<4x16x1xf32> to vector<4x16x16xf32>
    %22 = arith.subf %18, %21 : vector<4x16x16xf32>
    %23 = math.exp %22 : vector<4x16x16xf32>
    %cst_11 = arith.constant dense<0.000000e+00> : vector<4x16xf32>
    %24 = vector.multi_reduction <add>, %23, %cst_11 [2] : vector<4x16x16xf32> to vector<4x16xf32>
    %25 = vector.shape_cast %24 : vector<4x16xf32> to vector<4x16x1xf32>
    %26 = tpu.reciprocal %25 {approx = true} : vector<4x16x1xf32> -> vector<4x16x1xf32>
    %27 = vector.broadcast %26 : vector<4x16x1xf32> to vector<4x16x16xf32>
    %28 = arith.mulf %23, %27 : vector<4x16x16xf32>
    %29 = arith.truncf %28 : vector<4x16x16xf32> to vector<4x16x16xbf16>
    "tpu.trace_start"() <{level = 10 : i32, message = "hqk,hkd->hqd"}> : () -> ()
    %cst_12 = arith.constant dense<0.000000e+00> : vector<4x16x8xf32>
    %30 = tpu.matmul %29, %8, %cst_12 {dimension_numbers = #tpu.dot_dimension_numbers<[2], [1], [1], [2], [0, 0, 0, 1, 1, 2], [0], [0]>} : vector<4x16x16xbf16>, vector<4x16x8xbf16>, vector<4x16x8xf32> -> vector<4x16x8xf32>
    "tpu.trace_stop"() : () -> ()
    %31 = vector.extract_strided_slice %30 {offsets = [0, 0, 0], sizes = [1, 16, 8], strides = [1, 1, 1]} : vector<4x16x8xf32> to vector<1x16x8xf32>
    %32 = vector.shape_cast %31 : vector<1x16x8xf32> to vector<16x8xf32>
    %33 = vector.extract_strided_slice %30 {offsets = [1, 0, 0], sizes = [1, 16, 8], strides = [1, 1, 1]} : vector<4x16x8xf32> to vector<1x16x8xf32>
    %34 = vector.shape_cast %33 : vector<1x16x8xf32> to vector<16x8xf32>
    %35 = vector.extract_strided_slice %30 {offsets = [2, 0, 0], sizes = [1, 16, 8], strides = [1, 1, 1]} : vector<4x16x8xf32> to vector<1x16x8xf32>
    %36 = vector.shape_cast %35 : vector<1x16x8xf32> to vector<16x8xf32>
    %37 = vector.extract_strided_slice %30 {offsets = [3, 0, 0], sizes = [1, 16, 8], strides = [1, 1, 1]} : vector<4x16x8xf32> to vector<1x16x8xf32>
    %38 = vector.shape_cast %37 : vector<1x16x8xf32> to vector<16x8xf32>
    %39 = tpu.concatenate %32, %34, %36, %38 in 1 : vector<16x8xf32>, vector<16x8xf32>, vector<16x8xf32>, vector<16x8xf32> -> vector<16x32xf32>
    %40 = arith.truncf %39 : vector<16x32xf32> to vector<16x32xbf16>
    %c0_13 = arith.constant 0 : index
    %c0_14 = arith.constant 0 : index
    %41 = vector.load %arg6[%c0_13, %c0_14] : memref<32x32xbf16, #tpu.memory_space<vmem>>, vector<32x32xbf16>
    %cst_15 = arith.constant dense<0.000000e+00> : vector<16x32xf32>
    %42 = tpu.matmul %40, %41, %cst_15 {dimension_numbers = #tpu.dot_dimension_numbers<[1], [0], [0], [1], [0, 0, 1, 1], [], []>} : vector<16x32xbf16>, vector<32x32xbf16>, vector<16x32xf32> -> vector<16x32xf32>
    %c0_16 = arith.constant 0 : index
    %c0_17 = arith.constant 0 : index
    %43 = vector.load %arg7[%c0_16, %c0_17] : memref<1x32xf32, #tpu.memory_space<vmem>>, vector<1x32xf32>
    %44 = vector.broadcast %43 : vector<1x32xf32> to vector<16x32xf32>
    %45 = arith.addf %42, %44 : vector<16x32xf32>
    %c0_18 = arith.constant 0 : index
    %c0_19 = arith.constant 0 : index
    %c0_20 = arith.constant 0 : index
    %46 = vector.load %arg8[%c0_18, %c0_19, %c0_20] : memref<1x16x32xf32, #tpu.memory_space<vmem>>, vector<1x16x32xf32>
    %47 = vector.shape_cast %46 : vector<1x16x32xf32> to vector<16x32xf32>
    %48 = vector.shape_cast %45 : vector<16x32xf32> to vector<1x16x32xf32>
    tpu.vector_store %arg8[%c0_18, %c0_19, %c0_20], %48 {strides = array<i32>} : memref<1x16x32xf32, #tpu.memory_space<vmem>>, vector<1x16x32xf32>,
    return
  }
  func.func @transform_0(%arg0: i32, %arg1: i32) -> (i32, i32, i32) {
    %c0_i32 = arith.constant 0 : i32
    %c0_i32_0 = arith.constant 0 : i32
    %c0_i32_1 = arith.constant 0 : i32
    return %arg0, %c0_i32, %c0_i32_0 : i32, i32, i32
  }
  func.func @transform_1(%arg0: i32, %arg1: i32) -> (i32, i32) {
    %c0_i32 = arith.constant 0 : i32
    %c0_i32_0 = arith.constant 0 : i32
    %c0_i32_1 = arith.constant 0 : i32
    return %c0_i32, %c0_i32_0 : i32, i32
  }
  func.func @transform_2(%arg0: i32, %arg1: i32) -> (i32, i32) {
    %c0_i32 = arith.constant 0 : i32
    %c0_i32_0 = arith.constant 0 : i32
    %c0_i32_1 = arith.constant 0 : i32
    return %c0_i32, %c0_i32_0 : i32, i32
  }
  func.func @transform_3(%arg0: i32, %arg1: i32) -> (i32, i32) {
    %c0_i32 = arith.constant 0 : i32
    %c0_i32_0 = arith.constant 0 : i32
    %c0_i32_1 = arith.constant 0 : i32
    return %c0_i32, %c0_i32_0 : i32, i32
  }
  func.func @transform_4(%arg0: i32, %arg1: i32) -> (i32, i32) {
    %c0_i32 = arith.constant 0 : i32
    %c0_i32_0 = arith.constant 0 : i32
    %c0_i32_1 = arith.constant 0 : i32
    return %c0_i32, %c0_i32_0 : i32, i32
  }
  func.func @transform_5(%arg0: i32, %arg1: i32) -> (i32, i32) {
    %c0_i32 = arith.constant 0 : i32
    %c0_i32_0 = arith.constant 0 : i32
    %c0_i32_1 = arith.constant 0 : i32
    return %c0_i32, %c0_i32_0 : i32, i32
  }
  func.func @transform_6(%arg0: i32, %arg1: i32) -> (i32, i32, i32) {
    %c0_i32 = arith.constant 0 : i32
    %c0_i32_0 = arith.constant 0 : i32
    return %arg0, %arg1, %c0_i32 : i32, i32, i32
  }
}

</mosaic_0001>

<llo_original>
// kernel: tpu_custom_call.1
$region0: #{tpu_custom_call.1}
  #allocation0 [shape = 'u32[]', space=smem, size = 0x4, offset = 0x4, fixed_abs, tag = 'smem constant byte address 0x4 - core index']
  #allocation1 [shape = 'u32[144,128]{1,0:T(1,128)}', space=vmem, size = 0x12000, scoped, tag = 'internal scratch']
  #allocation2 [shape = 'bf16[4,16,8]{2,1,0:T(16,128)(2,1)}', space=vmem, size = 0x4000, scoped, tag = 'scratch operand']
  #allocation3 [shape = 'bf16[4,16,8]{2,1,0:T(16,128)(2,1)}', space=vmem, size = 0x4000, scoped, tag = 'scratch operand']
  #allocation4 [shape = 'bf16[4,16,8]{2,1,0:T(16,128)(2,1)}', space=vmem, size = 0x4000, scoped, tag = 'scratch operand']
  %s0 = inlined_call_operand.hbm [shape: f32[2,16,32], index: 0, kind: input, shape index: {}]
  %s1 = inlined_call_operand.vmem [shape: f32[1,32], index: 1, kind: input, shape index: {}]
  %s2 = inlined_call_operand.vmem [shape: f32[1,32], index: 2, kind: input, shape index: {}]
  %s3 = inlined_call_operand.hbm [shape: bf16[32,96], index: 3, kind: input, shape index: {}]
  %s4 = inlined_call_operand.hbm [shape: bf16[32,32], index: 4, kind: input, shape index: {}]
  %s5 = inlined_call_operand.vmem [shape: f32[1,32], index: 5, kind: input, shape index: {}]
  %s6 = inlined_call_operand.hbm [shape: f32[2,16,32], index: 6, kind: output, shape index: {}]
  %s7 = sld [smem:[#allocation0]]
  $region73: #{tpu_custom_call.1} parent=0
    _
  %s9 = ssub.s32 1, %s7
  %s10 = scalar_select 0, %s9, %s7
  $region1: #{tpu_custom_call.1} parent=0
    #allocation5 [shape = 'u8[16384]{0}', space=vmem, size = 0x4000, scoped, tag = 'input window, operand 0']
    #allocation6 [shape = 's32[2]{0}', space=sflag, size = 0x8, scoped, tag = 'scoped memory for tpu_custom_call.1']
    #allocation7 [shape = 's32[2]{0}', space=sflag, size = 0x8, scoped, tag = 'scoped memory for tpu_custom_call.1']
    #allocation8 [shape = 'u8[8192]{0}', space=vmem, size = 0x2000, scoped, tag = 'input window, operand 3, single buffered']
    #allocation9 [shape = 's32[1]{0}', space=sflag, size = 0x4, scoped, tag = 'scoped memory for tpu_custom_call.1']
    #allocation10 [shape = 'u8[8192]{0}', space=vmem, size = 0x2000, scoped, tag = 'input window, operand 4, single buffered']
    #allocation11 [shape = 'u8[16384]{0}', space=vmem, size = 0x4000, scoped, tag = 'output window, operand 0']
    %11 = vsyncpa [#allocation6], 0
    %s12 = scalar_lea.sflag [#allocation6], 1
    %13 = vsyncpa %s12, 0
    %14 = vsyncpa [#allocation9], 0
    %15 = vsyncpa [#allocation7], 0
    %s16 = scalar_lea.sflag [#allocation7], 1
    %17 = vsyncpa %s16, 0
    loop: start=0, step=1, limit=4
    $region2: #{tpu_custom_call.1} parent=1 // loop_pre_header
      _
    $region3: #{tpu_custom_call.1} parent=1 // loop_header
      %s19 = sphi 0, %s23
      %p20 = scmp.ge.s32.totalorder %s19, 4
      %s26 = sphi 0, %s38
      %s27 = sphi 0, %s34
      %s28 = sphi 0, %s26
      %s29 = sphi 0, %s27
      %s30 = sphi 0, %s28
      %s31 = sphi 0, %s29
      %s41 = sphi 0, %s43
      %s44 = sphi 0, %s41
      %s45 = sphi 0, %s44
      %s61 = sphi 0, %s45
      %s65 = sphi 0, %s65
      %s67 = sphi 0, %s65
      %s68 = sphi 0, %s67
      %s82 = sphi 0, %s68
      %s86 = sphi 0, %s86
      %s88 = sphi 0, %s86
      %s89 = sphi 0, %s88
      %s103 = sphi 0, %s89
      %s107 = sphi 0, %s107
      %s109 = sphi 0, %s107
      %s110 = sphi 0, %s109
      %s124 = sphi 0, %s110
      %s128 = sphi 0, %s128
      %s130 = sphi 0, %s128
      %s131 = sphi 0, %s130
      %s145 = sphi 0, %s131
      %s149 = sphi 0, %s149
      %s151 = sphi 0, %s149
      %s152 = sphi 0, %s151
      %s166 = sphi 0, %s152
      %s174 = sphi 0, %s176
      %s177 = sphi 0, %s174
      %s178 = sphi 0, %s177
      %s194 = sphi 0, %s178
    $region4: #{tpu_custom_call.1} parent=1 // loop_header_branch
      %22 = sbr.rel (%p20) target = $region8
    $region5: #{tpu_custom_call.1} parent=1 // loop_body
      %s24 = ssub.s32 %s19, 1
      %s25 = ssub.s32 %s19, 2
      %s32 = sadd.s32 1, %s27
      %p33 = scmp.ge.s32.totalorder %s32, 1
      %s34 = scalar_select %p33, 0, %s32
      %s35 = sadd.s32 1, %s26
      %s36 = scalar_select %p33, %s35, %s26
      %p37 = scmp.ge.s32.totalorder %s36, 2
      %s38 = scalar_select %p37, 0, %s36
      %s39 = ssub.s32 %s26, %s38
      %p40 = scmp.eq.s32.totalorder %s39, 0
      %s42 = sadd.s32 %s41, 1
      %s43 = scalar_select %p40, %s41, %s42
      %p46 = pneg %p40
      %p47 = scmp.eq.s32.totalorder %s19, 1
      %p48 = por %p46, %p47
      %p49 = scmp.ne.s32.totalorder %s41, %s44
      %p50 = scmp.eq.s32.totalorder %s19, 0
      %p51 = por %p49, %p50
      %p52 = scmp.ne.s32.totalorder %s41, %s44
      %p53 = scmp.eq.s32.totalorder %s24, 1
      %p54 = por %p52, %p53
      %p55 = scmp.ne.s32.totalorder %s44, %s45
      %p56 = scmp.eq.s32.totalorder %s24, 0
      %p57 = por %p55, %p56
      %p58 = scmp.ne.s32.totalorder %s44, %s45
      %p59 = scmp.eq.s32.totalorder %s25, 1
      %p60 = por %p58, %p59
      %p62 = scmp.ne.s32.totalorder %s45, %s61
      %p63 = scmp.eq.s32.totalorder %s25, 0
      %p64 = por %p62, %p63
      %s66 = sadd.s32 %s65, 1
      %p69 = scmp.eq.s32.totalorder %s19, 1
      %p70 = scmp.ne.s32.totalorder %s65, %s67
      %p71 = scmp.eq.s32.totalorder %s19, 0
      %p72 = por %p70, %p71
      %p73 = scmp.ne.s32.totalorder %s65, %s67
      %p74 = scmp.eq.s32.totalorder %s24, 1
      %p75 = por %p73, %p74
      %p76 = scmp.ne.s32.totalorder %s67, %s68
      %p77 = scmp.eq.s32.totalorder %s24, 0
      %p78 = por %p76, %p77
      %p79 = scmp.ne.s32.totalorder %s67, %s68
      %p80 = scmp.eq.s32.totalorder %s25, 1
      %p81 = por %p79, %p80
      %p83 = scmp.ne.s32.totalorder %s68, %s82
      %p84 = scmp.eq.s32.totalorder %s25, 0
      %p85 = por %p83, %p84
      %s87 = sadd.s32 %s86, 1
      %p90 = scmp.eq.s32.totalorder %s19, 1
      %p91 = scmp.ne.s32.totalorder %s86, %s88
      %p92 = scmp.eq.s32.totalorder %s19, 0
      %p93 = por %p91, %p92
      %p94 = scmp.ne.s32.totalorder %s86, %s88
      %p95 = scmp.eq.s32.totalorder %s24, 1
      %p96 = por %p94, %p95
      %p97 = scmp.ne.s32.totalorder %s88, %s89
      %p98 = scmp.eq.s32.totalorder %s24, 0
      %p99 = por %p97, %p98
      %p100 = scmp.ne.s32.totalorder %s88, %s89
      %p101 = scmp.eq.s32.totalorder %s25, 1
      %p102 = por %p100, %p101
      %p104 = scmp.ne.s32.totalorder %s89, %s103
      %p105 = scmp.eq.s32.totalorder %s25, 0
      %p106 = por %p104, %p105
      %s108 = sadd.s32 %s107, 1
      %p111 = scmp.eq.s32.totalorder %s19, 1
      %p112 = scmp.ne.s32.totalorder %s107, %s109
      %p113 = scmp.eq.s32.totalorder %s19, 0
      %p114 = por %p112, %p113
      %p115 = scmp.ne.s32.totalorder %s107, %s109
      %p116 = scmp.eq.s32.totalorder %s24, 1
      %p117 = por %p115, %p116
      %p118 = scmp.ne.s32.totalorder %s109, %s110
      %p119 = scmp.eq.s32.totalorder %s24, 0
      %p120 = por %p118, %p119
      %p121 = scmp.ne.s32.totalorder %s109, %s110
      %p122 = scmp.eq.s32.totalorder %s25, 1
      %p123 = por %p121, %p122
      %p125 = scmp.ne.s32.totalorder %s110, %s124
      %p126 = scmp.eq.s32.totalorder %s25, 0
      %p127 = por %p125, %p126
      %s129 = sadd.s32 %s128, 1
      %p132 = scmp.eq.s32.totalorder %s19, 1
      %p133 = scmp.ne.s32.totalorder %s128, %s130
      %p134 = scmp.eq.s32.totalorder %s19, 0
      %p135 = por %p133, %p134
      %p136 = scmp.ne.s32.totalorder %s128, %s130
      %p137 = scmp.eq.s32.totalorder %s24, 1
      %p138 = por %p136, %p137
      %p139 = scmp.ne.s32.totalorder %s130, %s131
      %p140 = scmp.eq.s32.totalorder %s24, 0
      %p141 = por %p139, %p140
      %p142 = scmp.ne.s32.totalorder %s130, %s131
      %p143 = scmp.eq.s32.totalorder %s25, 1
      %p144 = por %p142, %p143
      %p146 = scmp.ne.s32.totalorder %s131, %s145
      %p147 = scmp.eq.s32.totalorder %s25, 0
      %p148 = por %p146, %p147
      %s150 = sadd.s32 %s149, 1
      %p153 = scmp.eq.s32.totalorder %s19, 1
      %p154 = scmp.ne.s32.totalorder %s149, %s151
      %p155 = scmp.eq.s32.totalorder %s19, 0
      %p156 = por %p154, %p155
      %p157 = scmp.ne.s32.totalorder %s149, %s151
      %p158 = scmp.eq.s32.totalorder %s24, 1
      %p159 = por %p157, %p158
      %p160 = scmp.ne.s32.totalorder %s151, %s152
      %p161 = scmp.eq.s32.totalorder %s24, 0
      %p162 = por %p160, %p161
      %p163 = scmp.ne.s32.totalorder %s151, %s152
      %p164 = scmp.eq.s32.totalorder %s25, 1
      %p165 = por %p163, %p164
      %p167 = scmp.ne.s32.totalorder %s152, %s166
      %p168 = scmp.eq.s32.totalorder %s25, 0
      %p169 = por %p167, %p168
      %s170 = ssub.s32 %s26, %s38
      %s171 = ssub.s32 %s27, %s34
      %s172 = sor.u32 %s170, %s171
      %p173 = scmp.eq.s32.totalorder %s172, 0
      %s175 = sadd.s32 %s174, 1
      %s176 = scalar_select %p173, %s174, %s175
      %p179 = pneg %p173
      %p180 = scmp.eq.s32.totalorder %s19, 1
      %p181 = por %p179, %p180
      %p182 = scmp.ne.s32.totalorder %s174, %s177
      %p183 = scmp.eq.s32.totalorder %s19, 0
      %p184 = por %p182, %p183
      %p185 = scmp.ne.s32.totalorder %s174, %s177
      %p186 = scmp.eq.s32.totalorder %s24, 1
      %p187 = por %p185, %p186
      %p188 = scmp.ne.s32.totalorder %s177, %s178
      %p189 = scmp.eq.s32.totalorder %s24, 0
      %p190 = por %p188, %p189
      %p191 = scmp.ne.s32.totalorder %s177, %s178
      %p192 = scmp.eq.s32.totalorder %s25, 1
      %p193 = por %p191, %p192
      %p195 = scmp.ne.s32.totalorder %s178, %s194
      %p196 = scmp.eq.s32.totalorder %s25, 0
      %p197 = por %p195, %p196
      %p198 = scmp.le.s32.totalorder 1, %s19
      %p199 = scmp.lt.s32.totalorder %s19, 3
      %p200 = pnand %p198, %p199
      %p201 = pneg %p200
      // Predicated region
      $region9: #{tpu_custom_call.1} parent=5 // pred_check
        _
      $region10: #{tpu_custom_call.1} parent=5 // pred_check_branch
        %203 = sbr.rel (%p200) target = $region12
      $region11: #{tpu_custom_call.1} parent=5 // pred_region
        %s204 = ssub.s32 %s19, 1
        // Predicated region
        $region13: #{tpu_custom_call.1} parent=11 // pred_check
          %p205 = pneg %p78
        $region14: #{tpu_custom_call.1} parent=11 // pred_check_branch
          %207 = sbr.rel (%p205) target = $region16
        $region15: #{tpu_custom_call.1} parent=11 // pred_region
          _
        $region16: #{tpu_custom_call.1} parent=11 // pred_fallthru
          _
        // Predicated region
        $region17: #{tpu_custom_call.1} parent=11 // pred_check
          %p208 = pneg %p99
        $region18: #{tpu_custom_call.1} parent=11 // pred_check_branch
          %210 = sbr.rel (%p208) target = $region20
        $region19: #{tpu_custom_call.1} parent=11 // pred_region
          _
        $region20: #{tpu_custom_call.1} parent=11 // pred_fallthru
          _
        // Predicated region
        $region21: #{tpu_custom_call.1} parent=11 // pred_check
          %p211 = pneg %p120
        $region22: #{tpu_custom_call.1} parent=11 // pred_check_branch
          %213 = sbr.rel (%p211) target = $region24
        $region23: #{tpu_custom_call.1} parent=11 // pred_region
          %s215 = ssub.s32 256, 256
          %216 = vsyncadd [#allocation9], %s215
          %s217 = sshll.u32 [#allocation8], 4
          %s218 = int_to_ptr.vmem [resolvable:$true] %s217
          %223 = dma.hbm_to_vmem [thread:$0]  %s3, 256, %s218, [#allocation9], 64, 64, 4
        $region24: #{tpu_custom_call.1} parent=11 // pred_fallthru
          _
        // Predicated region
        $region25: #{tpu_custom_call.1} parent=11 // pred_check
          %p224 = pneg %p141
        $region26: #{tpu_custom_call.1} parent=11 // pred_check_branch
          %226 = sbr.rel (%p224) target = $region28
        $region27: #{tpu_custom_call.1} parent=11 // pred_region
          %s228 = ssub.s32 256, 256
          %229 = vsyncadd [#allocation9], %s228
          %s230 = sshll.u32 [#allocation10], 4
          %s231 = int_to_ptr.vmem [resolvable:$true] %s230
          %236 = dma.hbm_to_vmem [thread:$0]  %s4, 256, %s231, [#allocation9], 64, 64, 4
        $region28: #{tpu_custom_call.1} parent=11 // pred_fallthru
          _
        // Predicated region
        $region29: #{tpu_custom_call.1} parent=11 // pred_check
          %p237 = pneg %p162
        $region30: #{tpu_custom_call.1} parent=11 // pred_check_branch
          %239 = sbr.rel (%p237) target = $region32
        $region31: #{tpu_custom_call.1} parent=11 // pred_region
          _
        $region32: #{tpu_custom_call.1} parent=11 // pred_fallthru
          _
      $region12: #{tpu_custom_call.1} parent=5 // pred_fallthru
        _
      %p240 = scmp.lt.s32.totalorder %s19, 2
      // Predicated region
      $region33: #{tpu_custom_call.1} parent=5 // pred_check
        %p241 = pneg %p240
      $region34: #{tpu_custom_call.1} parent=5 // pred_check_branch
        %243 = sbr.rel (%p241) target = $region36
      $region35: #{tpu_custom_call.1} parent=5 // pred_region
        // Predicated region
        $region37: #{tpu_custom_call.1} parent=35 // pred_check
          %p244 = pneg %p51
        $region38: #{tpu_custom_call.1} parent=35 // pred_check_branch
          %246 = sbr.rel (%p244) target = $region40
        $region39: #{tpu_custom_call.1} parent=35 // pred_region
          %s247 = sand.u32 %s41, 1
          %s248 = scalar_lea.sflag [#allocation6], %s247
          %s249 = sand.u32 %s41, 1
          %s250 = smul.addr %s249, 16
          %s251 = scalar_lea.vmem [#allocation5], %s250
          %s253 = ssub.s32 256, 256
          %254 = vsyncadd %s248, %s253
          %s255 = smul.addr %s26, 2
          %s256 = smul.addr %s255, 128
          %s257 = scalar_lea.hbm %s0, %s256
          %s258 = sshll.u32 %s251, 4
          %s259 = int_to_ptr.vmem [resolvable:$true] %s258
          %264 = dma.hbm_to_vmem [thread:$0]  %s257, 256, %s259, %s248, 128, 128, 8
        $region40: #{tpu_custom_call.1} parent=35 // pred_fallthru
          _
      $region36: #{tpu_custom_call.1} parent=5 // pred_fallthru
        _
      %p265 = scmp.le.s32.totalorder 1, %s19
      %p266 = scmp.lt.s32.totalorder %s19, 3
      %p267 = pnand %p265, %p266
      %p268 = pneg %p267
      // Predicated region
      $region41: #{tpu_custom_call.1} parent=5 // pred_check
        _
      $region42: #{tpu_custom_call.1} parent=5 // pred_check_branch
        %270 = sbr.rel (%p267) target = $region44
      $region43: #{tpu_custom_call.1} parent=5 // pred_region
        %s271 = ssub.s32 %s19, 1
        %s272 = sand.u32 %s44, 1
        %s273 = scalar_lea.sflag [#allocation6], %s272
        %s274 = sand.u32 %s44, 1
        %s275 = smul.addr %s274, 16
        %s276 = scalar_lea.vmem [#allocation5], %s275
        // Predicated region
        $region45: #{tpu_custom_call.1} parent=43 // pred_check
          %p277 = pneg %p57
        $region46: #{tpu_custom_call.1} parent=43 // pred_check_branch
          %279 = sbr.rel (%p277) target = $region48
        $region47: #{tpu_custom_call.1} parent=43 // pred_region
          %280 = dma.done %s273, 256
        $region48: #{tpu_custom_call.1} parent=43 // pred_fallthru
          _
        // Predicated region
        $region49: #{tpu_custom_call.1} parent=43 // pred_check
          %p281 = pneg %p120
        $region50: #{tpu_custom_call.1} parent=43 // pred_check_branch
          %283 = sbr.rel (%p281) target = $region52
        $region51: #{tpu_custom_call.1} parent=43 // pred_region
          %284 = dma.done [#allocation9], 256
        $region52: #{tpu_custom_call.1} parent=43 // pred_fallthru
          _
        // Predicated region
        $region53: #{tpu_custom_call.1} parent=43 // pred_check
          %p285 = pneg %p141
        $region54: #{tpu_custom_call.1} parent=43 // pred_check_branch
          %287 = sbr.rel (%p285) target = $region56
        $region55: #{tpu_custom_call.1} parent=43 // pred_region
          %288 = dma.done [#allocation9], 256
        $region56: #{tpu_custom_call.1} parent=43 // pred_fallthru
          _
        %s289 = sand.u32 %s44, 1
        %s290 = scalar_lea.sflag [#allocation6], %s289
        %s291 = sand.u32 %s44, 1
        %s292 = smul.addr %s291, 16
        %s293 = scalar_lea.vmem [#allocation5], %s292
        %p294 = pneg %p57
        %p295 = pneg %p54
        %p296 = pneg %p78
        %p297 = pneg %p75
        %p298 = pneg %p99
        %p299 = pneg %p96
        %p300 = pneg %p120
        %p301 = pneg %p117
        %p302 = pneg %p141
        %p303 = pneg %p138
        %p304 = pneg %p162
        %p305 = pneg %p159
        %p306 = pneg %p190
        %p307 = pneg %p187
        %s308 = sand.u32 %s177, 1
        %s309 = scalar_lea.sflag [#allocation7], %s308
        %s310 = sand.u32 %s177, 1
        %s311 = smul.addr %s310, 16
        %s312 = scalar_lea.vmem [#allocation11], %s311
        %s313 = smul.u32 2, %s29
        %p315 = scmp.eq.s32.totalorder %s29, 0
        // Predicated region
        $region57: #{tpu_custom_call.1} parent=43 // pred_check
          %p316 = pneg %p315
        $region58: #{tpu_custom_call.1} parent=43 // pred_check_branch
          %318 = sbr.rel (%p316) target = $region60
        $region59: #{tpu_custom_call.1} parent=43 // pred_region
          %v319 = vld [vmem:[%s276] sm:$0xff]
          %v320 = vld [vmem:[%s276 + $0x8] sm:$0xff]
          %vm321 = vcmask 261120
          %v322 = vsel %vm321, %v319, 0.0
          %323 = vadd.xlane.f32.xlu0 %v322
          %v324 = vpop.xlane.xlu0 %323
          %v325 = vsel %vm321, %v320, 0.0
          %326 = vadd.xlane.f32.xlu0 %v325
          %v327 = vpop.xlane.xlu0 %326
          %v328 = vrcp.pop 32.0
          %v329 = vmul.f32 %v324, %v328
          %v330 = vmul.f32 %v327, %v328
          %v331 = vsub.f32 %v319, %v329
          %v332 = vsub.f32 %v320, %v330
          %v333 = vmul.f32 %v331, %v331
          %v334 = vmul.f32 %v332, %v332
          %v335 = vsel %vm321, %v333, 0.0
          %336 = vadd.xlane.f32.xlu0 %v335
          %v337 = vpop.xlane.xlu0 %336
          %v338 = vsel %vm321, %v334, 0.0
          %339 = vadd.xlane.f32.xlu0 %v338
          %v340 = vpop.xlane.xlu0 %339
          %v341 = vmul.f32 %v337, %v328
          %v342 = vmul.f32 %v340, %v328
          %v343 = vadd.f32 %v341, 1e-05
          %v344 = vadd.f32 %v342, 1e-05
          %v345 = vrsqrt.pop %v343
          %v346 = vrsqrt.pop %v344
          %v347 = vmul.f32 %v331, %v345
          %v348 = vmul.f32 %v332, %v346
          %v349 = vld [vmem:[%s1] sm:$0x1]
          %v351 = vlaneseq
          %v352 = vshrl.u32 %v351, 7
          %v353 = vsub.s32 0, %v352
          %v354 = vrot.slane %v349, %v353
          %v356 = vmul.f32 %v347, %v354
          %v357 = vmul.f32 %v348, %v354
          %v358 = vld [vmem:[%s2] sm:$0x1]
          %v360 = vlaneseq
          %v361 = vshrl.u32 %v360, 7
          %v362 = vsub.s32 0, %v361
          %v363 = vrot.slane %v358, %v362
          %v365 = vadd.f32 %v356, %v363
          %v366 = vadd.f32 %v357, %v363
          %v367 = vpack.c.bf16 %v366, %v365
          %v368 = vld [vmem:[#allocation8] sm:$0xf]
          %v369 = vld [vmem:[#allocation8 + $0x4] sm:$0xf]
          %v370 = vld [vmem:[#allocation8 + $0x8] sm:$0xf]
          %v371 = vld [vmem:[#allocation8 + $0xc] sm:$0xf]
          %v376 = vunpack.c.l.b16 %v368
          %v377 = vunpack.c.l.b16 %v369
          %v378 = vunpack.c.l.b16 %v370
          %v379 = vunpack.c.l.b16 %v371
          %v380 = vpack.c.b16 %v377, %v376
          %v381 = vpack.c.b16 %v379, %v378
          %v385 = vsel %vm321, %v367, 0
          %387 = vmatprep.subr.bf16.mxu0 0
          %388 = vmatpush1.bf16.msra.mxu0 %v380
          %389 = vmatprep.subr.bf16.mxu0 0
          %390 = vmatpush1.bf16.msra.mxu0 %v381
          %391 = vmatprep.subr.bf16.mxu0 0
          %392 = vmatpush1.bf16.msra.mxu0 0
          %393 = vmatprep.subr.bf16.mxu0 0
          %394 = vmatpush1.bf16.msra.mxu0 0
          %395 = vmatprep.subr.bf16.mxu0 0
          %396 = vmatpush1.bf16.msra.mxu0 0
          %397 = vmatprep.subr.bf16.mxu0 0
          %398 = vmatpush1.bf16.msra.mxu0 0
          %399 = vmatprep.subr.bf16.mxu0 0
          %400 = vmatpush1.bf16.msra.mxu0 0
          %401 = vmatprep.subr.bf16.mxu0 0
          %402 = vmatpush1.bf16.msra.mxu0 0
          %403 = vmatprep.subr.bf16.mxu0 0
          %404 = vmatpush1.bf16.msra.mxu0 0
          %405 = vmatprep.subr.bf16.mxu0 0
          %406 = vmatpush1.bf16.msra.mxu0 0
          %407 = vmatprep.subr.bf16.mxu0 0
          %408 = vmatpush1.bf16.msra.mxu0 0
          %409 = vmatprep.subr.bf16.mxu0 0
          %410 = vmatpush1.bf16.msra.mxu0 0
          %411 = vmatprep.subr.bf16.mxu0 0
          %412 = vmatpush1.bf16.msra.mxu0 0
          %413 = vmatprep.subr.bf16.mxu0 0
          %414 = vmatpush1.bf16.msra.mxu0 0
          %415 = vmatprep.subr.bf16.mxu0 0
          %416 = vmatpush1.bf16.msra.mxu0 0
          %417 = vmatprep.subr.bf16.mxu0 0
          %418 = vmatpush1.bf16.msra.mxu0 0
          %419 = vmatprep.mubr.bf16.mxu0 0
          %420 = vmatmul.mubr.bf16.gmra.mrb[0].mxu0 %v385
          %v421 = vpop.f32.mrb[0].mxu0
          %v422 = vadd.f32 0.0, %v421
          %v423 = vpop.f32.mrb[0].mxu0
          %v424 = vpop.f32.mrb[0].mxu0
          %v425 = vadd.f32 0.0, %v424
          %v426 = vpop.f32.mrb[0].mxu0
          %427 = vdwg.mxu0
          %v428 = vpack.c.bf16 %v425, %v422
          %vm429 = vcmask 64512
          %430 = vst.msk [vmem:[#allocation2] sm:$0xff] %vm429, %v428
          %432 = vrot.lane.b32.xlu0 %v428, 96
          %v433 = vpop.permute.xlu0 %432
          %435 = vst.msk [vmem:[#allocation3] sm:$0xff] %vm429, %v433
          %436 = vrot.lane.b32.xlu0 %v428, 64
          %v437 = vpop.permute.xlu0 %436
          %439 = vst.msk [vmem:[#allocation4] sm:$0xff] %vm429, %v437
          %440 = vrot.lane.b32.xlu0 %v428, 120
          %v441 = vpop.permute.xlu0 %440
          %s443 = scalar_lea.vmem [#allocation2], 8
          %444 = vst.msk [vmem:[%s443] sm:$0xff] %vm429, %v441
          %445 = vrot.lane.b32.xlu0 %v428, 88
          %v446 = vpop.permute.xlu0 %445
          %s448 = scalar_lea.vmem [#allocation3], 8
          %449 = vst.msk [vmem:[%s448] sm:$0xff] %vm429, %v446
          %450 = vrot.lane.b32.xlu0 %v428, 56
          %v451 = vpop.permute.xlu0 %450
          %s453 = scalar_lea.vmem [#allocation4], 8
          %454 = vst.msk [vmem:[%s453] sm:$0xff] %vm429, %v451
          %455 = vrot.lane.b32.xlu0 %v428, 112
          %v456 = vpop.permute.xlu0 %455
          %s458 = scalar_lea.vmem [#allocation2], 16
          %459 = vst.msk [vmem:[%s458] sm:$0xff] %vm429, %v456
          %460 = vrot.lane.b32.xlu0 %v428, 80
          %v461 = vpop.permute.xlu0 %460
          %s463 = scalar_lea.vmem [#allocation3], 16
          %464 = vst.msk [vmem:[%s463] sm:$0xff] %vm429, %v461
          %465 = vrot.lane.b32.xlu0 %v428, 48
          %v466 = vpop.permute.xlu0 %465
          %s468 = scalar_lea.vmem [#allocation4], 16
          %469 = vst.msk [vmem:[%s468] sm:$0xff] %vm429, %v466
          %470 = vrot.lane.b32.xlu0 %v428, 104
          %v471 = vpop.permute.xlu0 %470
          %s473 = scalar_lea.vmem [#allocation2], 24
          %474 = vst.msk [vmem:[%s473] sm:$0xff] %vm429, %v471
          %475 = vrot.lane.b32.xlu0 %v428, 72
          %v476 = vpop.permute.xlu0 %475
          %s478 = scalar_lea.vmem [#allocation3], 24
          %479 = vst.msk [vmem:[%s478] sm:$0xff] %vm429, %v476
          %480 = vrot.lane.b32.xlu0 %v428, 40
          %v481 = vpop.permute.xlu0 %480
          %s483 = scalar_lea.vmem [#allocation4], 24
          %484 = vst.msk [vmem:[%s483] sm:$0xff] %vm429, %v481
        $region60: #{tpu_custom_call.1} parent=43 // pred_fallthru
          _
        %s485 = smul.u32 %s29, 16
        %s486 = sshra.s32 %s485, 4
        %s487 = sand.u32 %s485, 15
        %s488 = smul.addr %s486, 8
        %s489 = scalar_lea.vmem [#allocation2], %s488
        %v490 = vld [vmem:[%s489] sm:$0xff]
        %v491 = vld [vmem:[%s489 + $0x8] sm:$0xff]
        %v492 = vld [vmem:[%s489 + $0x10] sm:$0xff]
        %v493 = vld [vmem:[%s489 + $0x18] sm:$0xff]
        %v494 = vld [vmem:[#allocation3] sm:$0xff]
        %v495 = vld [vmem:[#allocation3 + $0x8] sm:$0xff]
        %v496 = vld [vmem:[#allocation3 + $0x10] sm:$0xff]
        %v497 = vld [vmem:[#allocation3 + $0x18] sm:$0xff]
        %v498 = vld [vmem:[#allocation4] sm:$0xff]
        %v499 = vld [vmem:[#allocation4 + $0x8] sm:$0xff]
        %v500 = vld [vmem:[#allocation4 + $0x10] sm:$0xff]
        %v501 = vld [vmem:[#allocation4 + $0x18] sm:$0xff]
        %v502 = vlaneseq
        %v503 = vand.u32 %v502, 127
        %vm504 = vcmp.lt.s32.totalorder %v503, 8
        %v505 = vsel %vm504, 0.0, -1e+30
        %vm506 = vcmask 64512
        %v508 = vsel %vm506, %v490, 0
        %v511 = vsel %vm506, %v494, 0
        %513 = vmatprep.subr.bf16.mxu0 0
        %514 = vmatpush1.bf16.xpose.msra.mxu0 %v511
        %515 = vmatprep.subr.bf16.mxu0 0
        %516 = vmatpush1.bf16.xpose.msra.mxu0 0
        %517 = vmatprep.subr.bf16.mxu0 0
        %518 = vmatpush1.bf16.xpose.msra.mxu0 0
        %519 = vmatprep.subr.bf16.mxu0 0
        %520 = vmatpush1.bf16.xpose.msra.mxu0 0
        %521 = vmatprep.subr.bf16.mxu0 0
        %522 = vmatpush1.bf16.xpose.msra.mxu0 0
        %523 = vmatprep.subr.bf16.mxu0 0
        %524 = vmatpush1.bf16.xpose.msra.mxu0 0
        %525 = vmatprep.subr.bf16.mxu0 0
        %526 = vmatpush1.bf16.xpose.msra.mxu0 0
        %527 = vmatprep.subr.bf16.mxu0 0
        %528 = vmatpush1.bf16.xpose.msra.mxu0 0
        %529 = vmatprep.subr.bf16.mxu0 0
        %530 = vmatpush1.bf16.xpose.msra.mxu0 0
        %531 = vmatprep.subr.bf16.mxu0 0
        %532 = vmatpush1.bf16.xpose.msra.mxu0 0
        %533 = vmatprep.subr.bf16.mxu0 0
        %534 = vmatpush1.bf16.xpose.msra.mxu0 0
        %535 = vmatprep.subr.bf16.mxu0 0
        %536 = vmatpush1.bf16.xpose.msra.mxu0 0
        %537 = vmatprep.subr.bf16.mxu0 0
        %538 = vmatpush1.bf16.xpose.msra.mxu0 0
        %539 = vmatprep.subr.bf16.mxu0 0
        %540 = vmatpush1.bf16.xpose.msra.mxu0 0
        %541 = vmatprep.subr.bf16.mxu0 0
        %542 = vmatpush1.bf16.xpose.msra.mxu0 0
        %543 = vmatprep.subr.bf16.mxu0 0
        %544 = vmatpush1.bf16.xpose.msra.mxu0 0
        %545 = vmatprep.mubr.bf16.mxu0 0
        %546 = vmatmul.mubr.bf16.gmra.mrb[0].mxu0 %v508
        %v547 = vpop.f32.mrb[0].mxu0
        %v548 = vadd.f32 %v505, %v547
        %v549 = vpop.f32.mrb[0].mxu0
        %v550 = vpop.f32.mrb[0].mxu0
        %v551 = vadd.f32 %v505, %v550
        %v552 = vpop.f32.mrb[0].mxu0
        %553 = vdwg.mxu0
        %v555 = vsel %vm506, %v491, 0
        %v558 = vsel %vm506, %v495, 0
        %560 = vmatprep.subr.bf16.mxu0 0
        %561 = vmatpush1.bf16.xpose.msra.mxu0 %v558
        %562 = vmatprep.subr.bf16.mxu0 0
        %563 = vmatpush1.bf16.xpose.msra.mxu0 0
        %564 = vmatprep.subr.bf16.mxu0 0
        %565 = vmatpush1.bf16.xpose.msra.mxu0 0
        %566 = vmatprep.subr.bf16.mxu0 0
        %567 = vmatpush1.bf16.xpose.msra.mxu0 0
        %568 = vmatprep.subr.bf16.mxu0 0
        %569 = vmatpush1.bf16.xpose.msra.mxu0 0
        %570 = vmatprep.subr.bf16.mxu0 0
        %571 = vmatpush1.bf16.xpose.msra.mxu0 0
        %572 = vmatprep.subr.bf16.mxu0 0
        %573 = vmatpush1.bf16.xpose.msra.mxu0 0
        %574 = vmatprep.subr.bf16.mxu0 0
        %575 = vmatpush1.bf16.xpose.msra.mxu0 0
        %576 = vmatprep.subr.bf16.mxu0 0
        %577 = vmatpush1.bf16.xpose.msra.mxu0 0
        %578 = vmatprep.subr.bf16.mxu0 0
        %579 = vmatpush1.bf16.xpose.msra.mxu0 0
        %580 = vmatprep.subr.bf16.mxu0 0
        %581 = vmatpush1.bf16.xpose.msra.mxu0 0
        %582 = vmatprep.subr.bf16.mxu0 0
        %583 = vmatpush1.bf16.xpose.msra.mxu0 0
        %584 = vmatprep.subr.bf16.mxu0 0
        %585 = vmatpush1.bf16.xpose.msra.mxu0 0
        %586 = vmatprep.subr.bf16.mxu0 0
        %587 = vmatpush1.bf16.xpose.msra.mxu0 0
        %588 = vmatprep.subr.bf16.mxu0 0
        %589 = vmatpush1.bf16.xpose.msra.mxu0 0
        %590 = vmatprep.subr.bf16.mxu0 0
        %591 = vmatpush1.bf16.xpose.msra.mxu0 0
        %592 = vmatprep.mubr.bf16.mxu0 0
        %593 = vmatmul.mubr.bf16.gmra.mrb[0].mxu0 %v555
        %v594 = vpop.f32.mrb[0].mxu0
        %v595 = vadd.f32 %v505, %v594
        %v596 = vpop.f32.mrb[0].mxu0
        %v597 = vpop.f32.mrb[0].mxu0
        %v598 = vadd.f32 %v505, %v597
        %v599 = vpop.f32.mrb[0].mxu0
        %600 = vdwg.mxu0
        %v602 = vsel %vm506, %v492, 0
        %v605 = vsel %vm506, %v496, 0
        %607 = vmatprep.subr.bf16.mxu0 0
        %608 = vmatpush1.bf16.xpose.msra.mxu0 %v605
        %609 = vmatprep.subr.bf16.mxu0 0
        %610 = vmatpush1.bf16.xpose.msra.mxu0 0
        %611 = vmatprep.subr.bf16.mxu0 0
        %612 = vmatpush1.bf16.xpose.msra.mxu0 0
        %613 = vmatprep.subr.bf16.mxu0 0
        %614 = vmatpush1.bf16.xpose.msra.mxu0 0
        %615 = vmatprep.subr.bf16.mxu0 0
        %616 = vmatpush1.bf16.xpose.msra.mxu0 0
        %617 = vmatprep.subr.bf16.mxu0 0
        %618 = vmatpush1.bf16.xpose.msra.mxu0 0
        %619 = vmatprep.subr.bf16.mxu0 0
        %620 = vmatpush1.bf16.xpose.msra.mxu0 0
        %621 = vmatprep.subr.bf16.mxu0 0
        %622 = vmatpush1.bf16.xpose.msra.mxu0 0
        %623 = vmatprep.subr.bf16.mxu0 0
        %624 = vmatpush1.bf16.xpose.msra.mxu0 0
        %625 = vmatprep.subr.bf16.mxu0 0
        %626 = vmatpush1.bf16.xpose.msra.mxu0 0
        %627 = vmatprep.subr.bf16.mxu0 0
        %628 = vmatpush1.bf16.xpose.msra.mxu0 0
        %629 = vmatprep.subr.bf16.mxu0 0
        %630 = vmatpush1.bf16.xpose.msra.mxu0 0
        %631 = vmatprep.subr.bf16.mxu0 0
        %632 = vmatpush1.bf16.xpose.msra.mxu0 0
        %633 = vmatprep.subr.bf16.mxu0 0
        %634 = vmatpush1.bf16.xpose.msra.mxu0 0
        %635 = vmatprep.subr.bf16.mxu0 0
        %636 = vmatpush1.bf16.xpose.msra.mxu0 0
        %637 = vmatprep.subr.bf16.mxu0 0
        %638 = vmatpush1.bf16.xpose.msra.mxu0 0
        %639 = vmatprep.mubr.bf16.mxu0 0
        %640 = vmatmul.mubr.bf16.gmra.mrb[0].mxu0 %v602
        %v641 = vpop.f32.mrb[0].mxu0
        %v642 = vadd.f32 %v505, %v641
        %v643 = vpop.f32.mrb[0].mxu0
        %v644 = vpop.f32.mrb[0].mxu0
        %v645 = vadd.f32 %v505, %v644
        %v646 = vpop.f32.mrb[0].mxu0
        %647 = vdwg.mxu0
        %v649 = vsel %vm506, %v493, 0
        %v652 = vsel %vm506, %v497, 0
        %654 = vmatprep.subr.bf16.mxu0 0
        %655 = vmatpush1.bf16.xpose.msra.mxu0 %v652
        %656 = vmatprep.subr.bf16.mxu0 0
        %657 = vmatpush1.bf16.xpose.msra.mxu0 0
        %658 = vmatprep.subr.bf16.mxu0 0
        %659 = vmatpush1.bf16.xpose.msra.mxu0 0
        %660 = vmatprep.subr.bf16.mxu0 0
        %661 = vmatpush1.bf16.xpose.msra.mxu0 0
        %662 = vmatprep.subr.bf16.mxu0 0
        %663 = vmatpush1.bf16.xpose.msra.mxu0 0
        %664 = vmatprep.subr.bf16.mxu0 0
        %665 = vmatpush1.bf16.xpose.msra.mxu0 0
        %666 = vmatprep.subr.bf16.mxu0 0
        %667 = vmatpush1.bf16.xpose.msra.mxu0 0
        %668 = vmatprep.subr.bf16.mxu0 0
        %669 = vmatpush1.bf16.xpose.msra.mxu0 0
        %670 = vmatprep.subr.bf16.mxu0 0
        %671 = vmatpush1.bf16.xpose.msra.mxu0 0
        %672 = vmatprep.subr.bf16.mxu0 0
        %673 = vmatpush1.bf16.xpose.msra.mxu0 0
        %674 = vmatprep.subr.bf16.mxu0 0
        %675 = vmatpush1.bf16.xpose.msra.mxu0 0
        %676 = vmatprep.subr.bf16.mxu0 0
        %677 = vmatpush1.bf16.xpose.msra.mxu0 0
        %678 = vmatprep.subr.bf16.mxu0 0
        %679 = vmatpush1.bf16.xpose.msra.mxu0 0
        %680 = vmatprep.subr.bf16.mxu0 0
        %681 = vmatpush1.bf16.xpose.msra.mxu0 0
        %682 = vmatprep.subr.bf16.mxu0 0
        %683 = vmatpush1.bf16.xpose.msra.mxu0 0
        %684 = vmatprep.subr.bf16.mxu0 0
        %685 = vmatpush1.bf16.xpose.msra.mxu0 0
        %686 = vmatprep.mubr.bf16.mxu0 0
        %687 = vmatmul.mubr.bf16.gmra.mrb[0].mxu0 %v649
        %v688 = vpop.f32.mrb[0].mxu0
        %v689 = vadd.f32 %v505, %v688
        %v690 = vpop.f32.mrb[0].mxu0
        %v691 = vpop.f32.mrb[0].mxu0
        %v692 = vadd.f32 %v505, %v691
        %v693 = vpop.f32.mrb[0].mxu0
        %694 = vdwg.mxu0
        %vm695 = vcmask 130048
        %v696 = vsel %vm695, %v548, -inf
        %697 = vmax.xlane.f32.xlu0 %v696
        %v698 = vpop.xlane.xlu0 %697
        %v699 = vsel %vm695, %v551, -inf
        %700 = vmax.xlane.f32.xlu0 %v699
        %v701 = vpop.xlane.xlu0 %700
        %v702 = vsel %vm695, %v595, -inf
        %703 = vmax.xlane.f32.xlu0 %v702
        %v704 = vpop.xlane.xlu0 %703
        %v705 = vsel %vm695, %v598, -inf
        %706 = vmax.xlane.f32.xlu0 %v705
        %v707 = vpop.xlane.xlu0 %706
        %v708 = vsel %vm695, %v642, -inf
        %709 = vmax.xlane.f32.xlu0 %v708
        %v710 = vpop.xlane.xlu0 %709
        %v711 = vsel %vm695, %v645, -inf
        %712 = vmax.xlane.f32.xlu0 %v711
        %v713 = vpop.xlane.xlu0 %712
        %v714 = vsel %vm695, %v689, -inf
        %715 = vmax.xlane.f32.xlu0 %v714
        %v716 = vpop.xlane.xlu0 %715
        %v717 = vsel %vm695, %v692, -inf
        %718 = vmax.xlane.f32.xlu0 %v717
        %v719 = vpop.xlane.xlu0 %718
        %v720 = vsub.f32 %v548, %v698
        %v721 = vsub.f32 %v551, %v701
        %v722 = vsub.f32 %v595, %v704
        %v723 = vsub.f32 %v598, %v707
        %v724 = vsub.f32 %v642, %v710
        %v725 = vsub.f32 %v645, %v713
        %v726 = vsub.f32 %v689, %v716
        %v727 = vsub.f32 %v692, %v719
        %v728 = vmul.f32 %v720, 1.442695
        %v729 = vpow.pop %v728
        %v730 = vmul.f32 %v721, 1.442695
        %v731 = vpow.pop %v730
        %v732 = vmul.f32 %v722, 1.442695
        %v733 = vpow.pop %v732
        %v734 = vmul.f32 %v723, 1.442695
        %v735 = vpow.pop %v734
        %v736 = vmul.f32 %v724, 1.442695
        %v737 = vpow.pop %v736
        %v738 = vmul.f32 %v725, 1.442695
        %v739 = vpow.pop %v738
        %v740 = vmul.f32 %v726, 1.442695
        %v741 = vpow.pop %v740
        %v742 = vmul.f32 %v727, 1.442695
        %v743 = vpow.pop %v742
        %v744 = vsel %vm695, %v729, 0.0
        %745 = vadd.xlane.f32.xlu0 %v744
        %v746 = vpop.xlane.xlu0 %745
        %v747 = vsel %vm695, %v731, 0.0
        %748 = vadd.xlane.f32.xlu0 %v747
        %v749 = vpop.xlane.xlu0 %748
        %v750 = vsel %vm695, %v733, 0.0
        %751 = vadd.xlane.f32.xlu0 %v750
        %v752 = vpop.xlane.xlu0 %751
        %v753 = vsel %vm695, %v735, 0.0
        %754 = vadd.xlane.f32.xlu0 %v753
        %v755 = vpop.xlane.xlu0 %754
        %v756 = vsel %vm695, %v737, 0.0
        %757 = vadd.xlane.f32.xlu0 %v756
        %v758 = vpop.xlane.xlu0 %757
        %v759 = vsel %vm695, %v739, 0.0
        %760 = vadd.xlane.f32.xlu0 %v759
        %v761 = vpop.xlane.xlu0 %760
        %v762 = vsel %vm695, %v741, 0.0
        %763 = vadd.xlane.f32.xlu0 %v762
        %v764 = vpop.xlane.xlu0 %763
        %v765 = vsel %vm695, %v743, 0.0
        %766 = vadd.xlane.f32.xlu0 %v765
        %v767 = vpop.xlane.xlu0 %766
        %v768 = vrcp.pop %v746
        %v769 = vrcp.pop %v749
        %v770 = vrcp.pop %v752
        %v771 = vrcp.pop %v755
        %v772 = vrcp.pop %v758
        %v773 = vrcp.pop %v761
        %v774 = vrcp.pop %v764
        %v775 = vrcp.pop %v767
        %v776 = vmul.f32 %v729, %v768
        %v777 = vmul.f32 %v731, %v769
        %v778 = vmul.f32 %v733, %v770
        %v779 = vmul.f32 %v735, %v771
        %v780 = vmul.f32 %v737, %v772
        %v781 = vmul.f32 %v739, %v773
        %v782 = vmul.f32 %v741, %v774
        %v783 = vmul.f32 %v743, %v775
        %v784 = vpack.c.bf16 %v777, %v776
        %v785 = vpack.c.bf16 %v779, %v778
        %v786 = vpack.c.bf16 %v781, %v780
        %v787 = vpack.c.bf16 %v783, %v782
        %v789 = vsel %vm695, %v784, 0
        %791 = vmatprep.subr.bf16.mxu0 0
        %792 = vmatpush1.bf16.msra.mxu0 %v498
        %793 = vmatprep.subr.bf16.mxu0 0
        %794 = vmatpush1.bf16.msra.mxu0 0
        %795 = vmatprep.subr.bf16.mxu0 0
        %796 = vmatpush1.bf16.msra.mxu0 0
        %797 = vmatprep.subr.bf16.mxu0 0
        %798 = vmatpush1.bf16.msra.mxu0 0
        %799 = vmatprep.subr.bf16.mxu0 0
        %800 = vmatpush1.bf16.msra.mxu0 0
        %801 = vmatprep.subr.bf16.mxu0 0
        %802 = vmatpush1.bf16.msra.mxu0 0
        %803 = vmatprep.subr.bf16.mxu0 0
        %804 = vmatpush1.bf16.msra.mxu0 0
        %805 = vmatprep.subr.bf16.mxu0 0
        %806 = vmatpush1.bf16.msra.mxu0 0
        %807 = vmatprep.subr.bf16.mxu0 0
        %808 = vmatpush1.bf16.msra.mxu0 0
        %809 = vmatprep.subr.bf16.mxu0 0
        %810 = vmatpush1.bf16.msra.mxu0 0
        %811 = vmatprep.subr.bf16.mxu0 0
        %812 = vmatpush1.bf16.msra.mxu0 0
        %813 = vmatprep.subr.bf16.mxu0 0
        %814 = vmatpush1.bf16.msra.mxu0 0
        %815 = vmatprep.subr.bf16.mxu0 0
        %816 = vmatpush1.bf16.msra.mxu0 0
        %817 = vmatprep.subr.bf16.mxu0 0
        %818 = vmatpush1.bf16.msra.mxu0 0
        %819 = vmatprep.subr.bf16.mxu0 0
        %820 = vmatpush1.bf16.msra.mxu0 0
        %821 = vmatprep.subr.bf16.mxu0 0
        %822 = vmatpush1.bf16.msra.mxu0 0
        %823 = vmatprep.mubr.bf16.mxu0 0
        %824 = vmatmul.mubr.bf16.gmra.mrb[0].mxu0 %v789
        %v825 = vpop.f32.mrb[0].mxu0
        %v826 = vadd.f32 0.0, %v825
        %v827 = vpop.f32.mrb[0].mxu0
        %v828 = vpop.f32.mrb[0].mxu0
        %v829 = vadd.f32 0.0, %v828
        %v830 = vpop.f32.mrb[0].mxu0
        %831 = vdwg.mxu0
        %v833 = vsel %vm695, %v785, 0
        %835 = vmatprep.subr.bf16.mxu0 0
        %836 = vmatpush1.bf16.msra.mxu0 %v499
        %837 = vmatprep.subr.bf16.mxu0 0
        %838 = vmatpush1.bf16.msra.mxu0 0
        %839 = vmatprep.subr.bf16.mxu0 0
        %840 = vmatpush1.bf16.msra.mxu0 0
        %841 = vmatprep.subr.bf16.mxu0 0
        %842 = vmatpush1.bf16.msra.mxu0 0
        %843 = vmatprep.subr.bf16.mxu0 0
        %844 = vmatpush1.bf16.msra.mxu0 0
        %845 = vmatprep.subr.bf16.mxu0 0
        %846 = vmatpush1.bf16.msra.mxu0 0
        %847 = vmatprep.subr.bf16.mxu0 0
        %848 = vmatpush1.bf16.msra.mxu0 0
        %849 = vmatprep.subr.bf16.mxu0 0
        %850 = vmatpush1.bf16.msra.mxu0 0
        %851 = vmatprep.subr.bf16.mxu0 0
        %852 = vmatpush1.bf16.msra.mxu0 0
        %853 = vmatprep.subr.bf16.mxu0 0
        %854 = vmatpush1.bf16.msra.mxu0 0
        %855 = vmatprep.subr.bf16.mxu0 0
        %856 = vmatpush1.bf16.msra.mxu0 0
        %857 = vmatprep.subr.bf16.mxu0 0
        %858 = vmatpush1.bf16.msra.mxu0 0
        %859 = vmatprep.subr.bf16.mxu0 0
        %860 = vmatpush1.bf16.msra.mxu0 0
        %861 = vmatprep.subr.bf16.mxu0 0
        %862 = vmatpush1.bf16.msra.mxu0 0
        %863 = vmatprep.subr.bf16.mxu0 0
        %864 = vmatpush1.bf16.msra.mxu0 0
        %865 = vmatprep.subr.bf16.mxu0 0
        %866 = vmatpush1.bf16.msra.mxu0 0
        %867 = vmatprep.mubr.bf16.mxu0 0
        %868 = vmatmul.mubr.bf16.gmra.mrb[0].mxu0 %v833
        %v869 = vpop.f32.mrb[0].mxu0
        %v870 = vadd.f32 0.0, %v869
        %v871 = vpop.f32.mrb[0].mxu0
        %v872 = vpop.f32.mrb[0].mxu0
        %v873 = vadd.f32 0.0, %v872
        %v874 = vpop.f32.mrb[0].mxu0
        %875 = vdwg.mxu0
        %v877 = vsel %vm695, %v786, 0
        %879 = vmatprep.subr.bf16.mxu0 0
        %880 = vmatpush1.bf16.msra.mxu0 %v500
        %881 = vmatprep.subr.bf16.mxu0 0
        %882 = vmatpush1.bf16.msra.mxu0 0
        %883 = vmatprep.subr.bf16.mxu0 0
        %884 = vmatpush1.bf16.msra.mxu0 0
        %885 = vmatprep.subr.bf16.mxu0 0
        %886 = vmatpush1.bf16.msra.mxu0 0
        %887 = vmatprep.subr.bf16.mxu0 0
        %888 = vmatpush1.bf16.msra.mxu0 0
        %889 = vmatprep.subr.bf16.mxu0 0
        %890 = vmatpush1.bf16.msra.mxu0 0
        %891 = vmatprep.subr.bf16.mxu0 0
        %892 = vmatpush1.bf16.msra.mxu0 0
        %893 = vmatprep.subr.bf16.mxu0 0
        %894 = vmatpush1.bf16.msra.mxu0 0
        %895 = vmatprep.subr.bf16.mxu0 0
        %896 = vmatpush1.bf16.msra.mxu0 0
        %897 = vmatprep.subr.bf16.mxu0 0
        %898 = vmatpush1.bf16.msra.mxu0 0
        %899 = vmatprep.subr.bf16.mxu0 0
        %900 = vmatpush1.bf16.msra.mxu0 0
        %901 = vmatprep.subr.bf16.mxu0 0
        %902 = vmatpush1.bf16.msra.mxu0 0
        %903 = vmatprep.subr.bf16.mxu0 0
        %904 = vmatpush1.bf16.msra.mxu0 0
        %905 = vmatprep.subr.bf16.mxu0 0
        %906 = vmatpush1.bf16.msra.mxu0 0
        %907 = vmatprep.subr.bf16.mxu0 0
        %908 = vmatpush1.bf16.msra.mxu0 0
        %909 = vmatprep.subr.bf16.mxu0 0
        %910 = vmatpush1.bf16.msra.mxu0 0
        %911 = vmatprep.mubr.bf16.mxu0 0
        %912 = vmatmul.mubr.bf16.gmra.mrb[0].mxu0 %v877
        %v913 = vpop.f32.mrb[0].mxu0
        %v914 = vadd.f32 0.0, %v913
        %v915 = vpop.f32.mrb[0].mxu0
        %v916 = vpop.f32.mrb[0].mxu0
        %v917 = vadd.f32 0.0, %v916
        %v918 = vpop.f32.mrb[0].mxu0
        %919 = vdwg.mxu0
        %v921 = vsel %vm695, %v787, 0
        %923 = vmatprep.subr.bf16.mxu0 0
        %924 = vmatpush1.bf16.msra.mxu0 %v501
        %925 = vmatprep.subr.bf16.mxu0 0
        %926 = vmatpush1.bf16.msra.mxu0 0
        %927 = vmatprep.subr.bf16.mxu0 0
        %928 = vmatpush1.bf16.msra.mxu0 0
        %929 = vmatprep.subr.bf16.mxu0 0
        %930 = vmatpush1.bf16.msra.mxu0 0
        %931 = vmatprep.subr.bf16.mxu0 0
        %932 = vmatpush1.bf16.msra.mxu0 0
        %933 = vmatprep.subr.bf16.mxu0 0
        %934 = vmatpush1.bf16.msra.mxu0 0
        %935 = vmatprep.subr.bf16.mxu0 0
        %936 = vmatpush1.bf16.msra.mxu0 0
        %937 = vmatprep.subr.bf16.mxu0 0
        %938 = vmatpush1.bf16.msra.mxu0 0
        %939 = vmatprep.subr.bf16.mxu0 0
        %940 = vmatpush1.bf16.msra.mxu0 0
        %941 = vmatprep.subr.bf16.mxu0 0
        %942 = vmatpush1.bf16.msra.mxu0 0
        %943 = vmatprep.subr.bf16.mxu0 0
        %944 = vmatpush1.bf16.msra.mxu0 0
        %945 = vmatprep.subr.bf16.mxu0 0
        %946 = vmatpush1.bf16.msra.mxu0 0
        %947 = vmatprep.subr.bf16.mxu0 0
        %948 = vmatpush1.bf16.msra.mxu0 0
        %949 = vmatprep.subr.bf16.mxu0 0
        %950 = vmatpush1.bf16.msra.mxu0 0
        %951 = vmatprep.subr.bf16.mxu0 0
        %952 = vmatpush1.bf16.msra.mxu0 0
        %953 = vmatprep.subr.bf16.mxu0 0
        %954 = vmatpush1.bf16.msra.mxu0 0
        %955 = vmatprep.mubr.bf16.mxu0 0
        %956 = vmatmul.mubr.bf16.gmra.mrb[0].mxu0 %v921
        %v957 = vpop.f32.mrb[0].mxu0
        %v958 = vadd.f32 0.0, %v957
        %v959 = vpop.f32.mrb[0].mxu0
        %v960 = vpop.f32.mrb[0].mxu0
        %v961 = vadd.f32 0.0, %v960
        %v962 = vpop.f32.mrb[0].mxu0
        %963 = vdwg.mxu0
        %966 = vrot.lane.b32.xlu0 %v870, 8
        %v967 = vpop.permute.xlu0 %966
        %968 = vrot.lane.b32.xlu0 %v873, 8
        %v969 = vpop.permute.xlu0 %968
        %974 = vrot.lane.b32.xlu0 %v914, 16
        %v975 = vpop.permute.xlu0 %974
        %976 = vrot.lane.b32.xlu0 %v917, 16
        %v977 = vpop.permute.xlu0 %976
        %982 = vrot.lane.b32.xlu0 %v958, 24
        %v983 = vpop.permute.xlu0 %982
        %984 = vrot.lane.b32.xlu0 %v961, 24
        %v985 = vpop.permute.xlu0 %984
        %v988 = vsel %vm506, %v826, %v967
        %v989 = vsel %vm506, %v829, %v969
        %v990 = vsel %vm695, %v988, %v975
        %v991 = vsel %vm695, %v989, %v977
        %vm992 = vcmask 195584
        %v993 = vsel %vm992, %v990, %v983
        %v994 = vsel %vm992, %v991, %v985
        %v995 = vpack.c.bf16 %v994, %v993
        %v996 = vld [vmem:[#allocation10] sm:$0xf]
        %v997 = vld [vmem:[#allocation10 + $0x4] sm:$0xf]
        %v998 = vld [vmem:[#allocation10 + $0x8] sm:$0xf]
        %v999 = vld [vmem:[#allocation10 + $0xc] sm:$0xf]
        %v1000 = vld [vmem:[%s5] sm:$0x1]
        %v1002 = vlaneseq
        %v1003 = vshrl.u32 %v1002, 7
        %v1004 = vsub.s32 0, %v1003
        %v1005 = vrot.slane %v1000, %v1004
        %v1011 = vunpack.c.l.b16 %v996
        %v1012 = vunpack.c.l.b16 %v997
        %v1013 = vunpack.c.l.b16 %v998
        %v1014 = vunpack.c.l.b16 %v999
        %v1015 = vpack.c.b16 %v1012, %v1011
        %v1016 = vpack.c.b16 %v1014, %v1013
        %vm1019 = vcmask 261120
        %v1021 = vsel %vm1019, %v995, 0
        %1023 = vmatprep.subr.bf16.mxu0 0
        %1024 = vmatpush1.bf16.msra.mxu0 %v1015
        %1025 = vmatprep.subr.bf16.mxu0 0
        %1026 = vmatpush1.bf16.msra.mxu0 %v1016
        %1027 = vmatprep.subr.bf16.mxu0 0
        %1028 = vmatpush1.bf16.msra.mxu0 0
        %1029 = vmatprep.subr.bf16.mxu0 0
        %1030 = vmatpush1.bf16.msra.mxu0 0
        %1031 = vmatprep.subr.bf16.mxu0 0
        %1032 = vmatpush1.bf16.msra.mxu0 0
        %1033 = vmatprep.subr.bf16.mxu0 0
        %1034 = vmatpush1.bf16.msra.mxu0 0
        %1035 = vmatprep.subr.bf16.mxu0 0
        %1036 = vmatpush1.bf16.msra.mxu0 0
        %1037 = vmatprep.subr.bf16.mxu0 0
        %1038 = vmatpush1.bf16.msra.mxu0 0
        %1039 = vmatprep.subr.bf16.mxu0 0
        %1040 = vmatpush1.bf16.msra.mxu0 0
        %1041 = vmatprep.subr.bf16.mxu0 0
        %1042 = vmatpush1.bf16.msra.mxu0 0
        %1043 = vmatprep.subr.bf16.mxu0 0
        %1044 = vmatpush1.bf16.msra.mxu0 0
        %1045 = vmatprep.subr.bf16.mxu0 0
        %1046 = vmatpush1.bf16.msra.mxu0 0
        %1047 = vmatprep.subr.bf16.mxu0 0
        %1048 = vmatpush1.bf16.msra.mxu0 0
        %1049 = vmatprep.subr.bf16.mxu0 0
        %1050 = vmatpush1.bf16.msra.mxu0 0
        %1051 = vmatprep.subr.bf16.mxu0 0
        %1052 = vmatpush1.bf16.msra.mxu0 0
        %1053 = vmatprep.subr.bf16.mxu0 0
        %1054 = vmatpush1.bf16.msra.mxu0 0
        %1055 = vmatprep.mubr.bf16.mxu0 0
        %1056 = vmatmul.mubr.bf16.gmra.mrb[0].mxu0 %v1021
        %v1057 = vpop.f32.mrb[0].mxu0
        %v1058 = vadd.f32 %v1005, %v1057
        %v1059 = vpop.f32.mrb[0].mxu0
        %v1060 = vpop.f32.mrb[0].mxu0
        %v1061 = vadd.f32 %v1005, %v1060
        %v1062 = vpop.f32.mrb[0].mxu0
        %1063 = vdwg.mxu0
        %1064 = vst.msk [vmem:[%s312] sm:$0xff] %vm1019, %v1058
        %1065 = vst.msk [vmem:[%s312 + $0x8] sm:$0xff] %vm1019, %v1061
        %s1066 = sand.u32 %s177, 1
        %s1067 = scalar_lea.sflag [#allocation7], %s1066
        %s1068 = sand.u32 %s177, 1
        %s1069 = smul.addr %s1068, 16
        %s1070 = scalar_lea.vmem [#allocation11], %s1069
        // Predicated region
        $region61: #{tpu_custom_call.1} parent=43 // pred_check
          %p1071 = pneg %p187
        $region62: #{tpu_custom_call.1} parent=43 // pred_check_branch
          %1073 = sbr.rel (%p1071) target = $region64
        $region63: #{tpu_custom_call.1} parent=43 // pred_region
          %s1074 = smul.u32 2, %s29
          %s1076 = ssub.s32 256, 256
          %1077 = vsyncadd %s1067, %s1076
          %s1078 = smul.addr %s28, 2
          %s1079 = sadd.s32 %s1074, %s1078
          %s1080 = smul.addr %s1079, 128
          %s1081 = scalar_lea.hbm %s6, %s1080
          %s1082 = sshll.u32 %s1070, 4
          %s1083 = int_to_ptr.vmem [resolvable:$true] %s1082
          %1088 = dma.vmem_to_hbm [thread:$0]  %s1083, 256, %s1081, %s1067, 128, 128, 8
        $region64: #{tpu_custom_call.1} parent=43 // pred_fallthru
          _
      $region44: #{tpu_custom_call.1} parent=5 // pred_fallthru
        _
      %p1089 = scmp.le.s32.totalorder 2, %s19
      // Predicated region
      $region65: #{tpu_custom_call.1} parent=5 // pred_check
        %p1090 = pneg %p1089
      $region66: #{tpu_custom_call.1} parent=5 // pred_check_branch
        %1092 = sbr.rel (%p1090) target = $region68
      $region67: #{tpu_custom_call.1} parent=5 // pred_region
        %s1093 = ssub.s32 %s19, 2
        // Predicated region
        $region69: #{tpu_custom_call.1} parent=67 // pred_check
          %p1094 = pneg %p193
        $region70: #{tpu_custom_call.1} parent=67 // pred_check_branch
          %1096 = sbr.rel (%p1094) target = $region72
        $region71: #{tpu_custom_call.1} parent=67 // pred_region
          %s1097 = sand.u32 %s178, 1
          %s1098 = scalar_lea.sflag [#allocation7], %s1097
          %s1099 = sand.u32 %s178, 1
          %s1100 = smul.addr %s1099, 16
          %s1101 = scalar_lea.vmem [#allocation11], %s1100
          %1102 = dma.done %s1098, 256
        $region72: #{tpu_custom_call.1} parent=67 // pred_fallthru
          _
      $region68: #{tpu_custom_call.1} parent=5 // pred_fallthru
        _
    $region6: #{tpu_custom_call.1} parent=1 // loop_footer
      %s23 = sadd.s32 1, %s19
    $region7: #{tpu_custom_call.1} parent=1 // loop_footer_branch
      %18 = sbr.rel target = $region3
    $region8: #{tpu_custom_call.1} parent=1 // loop_exit
      _
    %1103 = vsyncpa [#allocation6], 1
    %s1104 = scalar_lea.sflag [#allocation6], 1
    %1105 = vsyncpa %s1104, 1
    %1106 = vsyncpa [#allocation9], 1
    %1107 = vsyncpa [#allocation7], 1
    %s1108 = scalar_lea.sflag [#allocation7], 1
    %1109 = vsyncpa %s1108, 1

</llo_original>
